<compile_context>
chip_gen: v7x
topology: tpu7x:2x2x1
jax: 0.10.0
libtpu: 0.0.40
codegen_flags: <defaults>
</compile_context>

<pallas_src>
import math

import jax
import jax.numpy as jnp
import numpy as np
from jax.experimental import pallas as pl
from jax.experimental.pallas import tpu as pltpu


def _bicro_kernel(pi_ref, pj_ref, wqT_ref, wkT_ref, wvT_ref,
                  bq_ref, bk_ref, bv_ref, out_ref):
    M, TB, S, D = pj_ref.shape
    cdt = pj_ref.dtype                      # MXU compute dtype (bf16 by default)

    # Flatten batch/modality dims into the sublane axis.  S is a multiple of 8
    # and the lane dim (D) is untouched, so these are sublane-only merges
    # (no materialized relayout copies).
    pi = pi_ref[...].reshape(TB * S, D)
    pj = pj_ref[...].reshape(M * TB * S, D)

    # Fat projection matmuls, f32 accumulation on the MXU.  The attention
    # scale is already folded into wqT / bq.
    q = (jnp.dot(pi, wqT_ref[...], preferred_element_type=jnp.float32)
         + bq_ref[...]).reshape(TB, S, D)
    k = (jnp.dot(pj, wkT_ref[...], preferred_element_type=jnp.float32)
         + bk_ref[...]).reshape(M, TB, S, D)
    v = (jnp.dot(pj, wvT_ref[...], preferred_element_type=jnp.float32)
         + bv_ref[...]).reshape(M, TB, S, D)

    # Q is computed once per grid step and reused for every other modality.
    q_c = q.astype(cdt)

    # Static (unrolled at trace time) loop over the M other modalities:
    # 3-D batched einsums, no broadcast of Q, per-modality static-slice store.
    for j in range(M):
        k_j = k[j].astype(cdt)
        v_j = v[j].astype(cdt)

        s = jnp.einsum('bqd,bkd->bqk', q_c, k_j,
                       preferred_element_type=jnp.float32)        # (TB, S, S) f32

        # Numerically-stable softmax over keys (matches nn.Softmax(dim=-1)).
        s = s - jnp.max(s, axis=-1, keepdims=True)
        p = jnp.exp(s)
        p = p * pl.reciprocal(jnp.sum(p, axis=-1, keepdims=True), approx=True)

        o = jnp.einsum('bqk,bkd->bqd', p.astype(cdt), v_j,
                       preferred_element_type=jnp.float32)        # (TB, S, D) f32

        # torch.cat(attended, dim=-1) layout, written with a static lane slice.
        out_ref[:, :, j * D:(j + 1) * D] = o.astype(out_ref.dtype)


def _pick_batch_block(B, M, S, D, in_bytes, out_bytes, max_batch_block=None,
                      vmem_budget=24 * 1024 * 1024):
    """Largest divisor of B whose per-step VMEM footprint fits the budget."""
    per_row = (2 * (1 + M) * S * D * in_bytes      # double-buffered P_i + P_others
               + 2 * S * M * D * out_bytes         # double-buffered output tile
               + (1 + 2 * M) * S * D * 4           # q / k / v in f32
               + 2 * S * S * 4                     # scores + probs (per modality)
               + S * D * 4)                        # per-modality attended output
    cap = max(1, vmem_budget // max(per_row, 1))
    if max_batch_block is not None:
        cap = min(cap, max_batch_block)
    tb = 1
    for d in range(1, B + 1):
        if B % d == 0 and d <= cap:
            tb = d
    return tb


def bicro_attention(P_i, *P_others, Wq, bq, Wk, bk, Wv, bv,
                    compute_dtype=jnp.bfloat16, max_batch_block=None):
    """P_i: (B, S, D); P_others: M tensors of shape (B, S, D).
    Returns (B, S, M*D), matching BiCroAttention.forward."""
    P_o = jnp.stack(P_others, axis=0)               # (M, B, S, D)
    M, B, S, D = P_o.shape
    out_dtype = P_i.dtype
    scale = 1.0 / math.sqrt(D)

    in_bytes = jnp.dtype(compute_dtype).itemsize
    out_bytes = jnp.dtype(out_dtype).itemsize
    tb = _pick_batch_block(B, M, S, D, in_bytes, out_bytes, max_batch_block)

    # Pre-transpose weights (kernel computes x @ W^T as x @ WT), fold the
    # attention scale into the Q projection, cast MXU operands to the compute
    # dtype.  Biases stay f32 (added to the f32 accumulator).
    WqT = (Wq.T * scale).astype(compute_dtype)
    WkT = Wk.T.astype(compute_dtype)
    WvT = Wv.T.astype(compute_dtype)
    bq2 = (bq * scale).reshape(1, D).astype(jnp.float32)
    bk2 = bk.reshape(1, D).astype(jnp.float32)
    bv2 = bv.reshape(1, D).astype(jnp.float32)
    Pi_c = P_i.astype(compute_dtype)
    Po_c = P_o.astype(compute_dtype)

    flops = 2 * B * S * D * D * (1 + 2 * M) + 4 * M * B * S * S * D
    cost = pl.CostEstimate(
        flops=flops,
        transcendentals=M * B * S * S,
        bytes_accessed=((Pi_c.size + Po_c.size + 3 * D * D) * in_bytes
                        + 3 * D * 4 + B * S * M * D * out_bytes))

    out = pl.pallas_call(
        _bicro_kernel,
        out_shape=jax.ShapeDtypeStruct((B, S, M * D), out_dtype),
        grid_spec=pltpu.PrefetchScalarGridSpec(
            num_scalar_prefetch=0,
            grid=(B // tb,),
            in_specs=[
                pl.BlockSpec((tb, S, D), lambda b: (b, 0, 0)),        # P_i tile
                pl.BlockSpec((M, tb, S, D), lambda b: (0, b, 0, 0)),  # all other mods
                pl.BlockSpec((D, D), lambda b: (0, 0)),               # Wq^T (scaled)
                pl.BlockSpec((D, D), lambda b: (0, 0)),               # Wk^T
                pl.BlockSpec((D, D), lambda b: (0, 0)),               # Wv^T
                pl.BlockSpec((1, D), lambda b: (0, 0)),               # bq (scaled)
                pl.BlockSpec((1, D), lambda b: (0, 0)),               # bk
                pl.BlockSpec((1, D), lambda b: (0, 0)),               # bv
            ],
            # Concatenated layout (B, S, M*D) written directly.
            out_specs=pl.BlockSpec((tb, S, M * D), lambda b: (b, 0, 0)),
        ),
        compiler_params=pltpu.CompilerParams(
            dimension_semantics=("parallel",),
            vmem_limit_bytes=32 * 1024 * 1024),
        cost_estimate=cost,
    )(Pi_c, Po_c, WqT, WkT, WvT, bq2, bk2, bv2)

    return out


def _xavier_uniform(key, fan_out, fan_in, dtype=jnp.float32):
    limit = math.sqrt(6.0 / (fan_in + fan_out))
    return jax.random.uniform(key, (fan_out, fan_in), dtype=dtype,
                              minval=-limit, maxval=limit)


def _reference(P_i, P_others, Wq, bq, Wk, bk, Wv, bv):
    D = P_i.shape[-1]
    scale = 1.0 / math.sqrt(D)
    hp = jax.lax.Precision.HIGHEST
    Qi = jnp.dot(P_i, Wq.T, precision=hp) + bq
    outs = []
    for P_j in P_others:
        Kj = jnp.dot(P_j, Wk.T, precision=hp) + bk
        Vj = jnp.dot(P_j, Wv.T, precision=hp) + bv
        s = jnp.einsum('bqd,bkd->bqk', Qi, Kj, precision=hp) * scale
        p = jax.nn.softmax(s, axis=-1)
        outs.append(jnp.einsum('bqk,bkd->bqd', p, Vj, precision=hp))
    return jnp.concatenate(outs, axis=-1)


if __name__ == "__main__":
    B, S, D, M = 4, 8, 32, 3   # batch, seq, modal_dim, num other modalities

    key = jax.random.PRNGKey(0)
    k_pi, k_po, k_wq, k_wk, k_wv = jax.random.split(key, 5)

    P_i = jax.random.normal(k_pi, (B, S, D), dtype=jnp.float32)
    P_others = [p for p in jax.random.normal(k_po, (M, B, S, D), dtype=jnp.float32)]

    # LinearXavier(modal_dim, modal_dim): xavier-uniform weights, zero bias.
    Wq = _xavier_uniform(k_wq, D, D)
    Wk = _xavier_uniform(k_wk, D, D)
    Wv = _xavier_uniform(k_wv, D, D)
    bq = jnp.zeros((D,), jnp.float32)
    bk = jnp.zeros((D,), jnp.float32)
    bv = jnp.zeros((D,), jnp.float32)

    ref = _reference(P_i, P_others, Wq, bq, Wk, bk, Wv, bv)

    # Default (bf16-MXU) path.  max_batch_block=2 -> grid=(2,), exercising the
    # multi-batch blocking / index maps at these tiny shapes.
    out = bicro_attention(P_i, *P_others, Wq=Wq, bq=bq, Wk=Wk, bk=bk, Wv=Wv, bv=bv,
                          max_batch_block=2)
    out = jax.block_until_ready(out)
    assert out.shape == (B, S, M * D)
    # Tolerance reflects bf16 operand rounding in the MXU matmuls (accumulation
    # is f32); structural errors would be orders of magnitude larger.
    np.testing.assert_allclose(np.asarray(out), np.asarray(ref),
                               rtol=5e-2, atol=5e-2)

    # f32 compute path: tight structural check (only remaining deviation from
    # the XLA reference is the EUP approx reciprocal in the softmax).
    out_f32 = bicro_attention(P_i, *P_others, Wq=Wq, bq=bq, Wk=Wk, bk=bk,
                              Wv=Wv, bv=bv, compute_dtype=jnp.float32,
                              max_batch_block=2)
    out_f32 = jax.block_until_ready(out_f32)
    np.testing.assert_allclose(np.asarray(out_f32), np.asarray(ref),
                               rtol=1e-2, atol=1e-2)

    print("KERNEL_OK")
</pallas_src>

<mosaic_0001>
module attributes {stable_mosaic.version = 11 : i64} {
  func.func @_bicro_kernel(%arg0: i32, %arg1: memref<2x8x32xbf16, #tpu.memory_space<vmem>>, %arg2: memref<3x2x8x32xbf16, #tpu.memory_space<vmem>>, %arg3: memref<32x32xbf16, #tpu.memory_space<vmem>>, %arg4: memref<32x32xbf16, #tpu.memory_space<vmem>>, %arg5: memref<32x32xbf16, #tpu.memory_space<vmem>>, %arg6: memref<1x32xf32, #tpu.memory_space<vmem>>, %arg7: memref<1x32xf32, #tpu.memory_space<vmem>>, %arg8: memref<1x32xf32, #tpu.memory_space<vmem>>, %arg9: memref<2x8x96xf32, #tpu.memory_space<vmem>>) attributes {dimension_semantics = [#tpu.dimension_semantics<parallel>], iteration_bounds = array<i64: 2>, scalar_prefetch = 0 : i64, scratch_operands = 0 : i64, tpu.core_type = #tpu.core_type<tc>, window_params = [{transform_indices = @transform_0, window_bounds = array<i64: 2, 8, 32>}, {transform_indices = @transform_1, window_bounds = array<i64: 3, 2, 8, 32>}, {pipeline_mode = #tpu.pipeline_mode<synchronous>, transform_indices = @transform_2, window_bounds = array<i64: 32, 32>}, {pipeline_mode = #tpu.pipeline_mode<synchronous>, transform_indices = @transform_3, window_bounds = array<i64: 32, 32>}, {pipeline_mode = #tpu.pipeline_mode<synchronous>, transform_indices = @transform_4, window_bounds = array<i64: 32, 32>}, {pipeline_mode = #tpu.pipeline_mode<synchronous>, transform_indices = @transform_5, window_bounds = array<i64: 1, 32>}, {pipeline_mode = #tpu.pipeline_mode<synchronous>, transform_indices = @transform_6, window_bounds = array<i64: 1, 32>}, {pipeline_mode = #tpu.pipeline_mode<synchronous>, transform_indices = @transform_7, window_bounds = array<i64: 1, 32>}, {transform_indices = @transform_8, window_bounds = array<i64: 2, 8, 96>}]} {
    %c0 = arith.constant 0 : index
    %c0_0 = arith.constant 0 : index
    %c0_1 = arith.constant 0 : index
    %0 = vector.load %arg1[%c0, %c0_0, %c0_1] : memref<2x8x32xbf16, #tpu.memory_space<vmem>>, vector<2x8x32xbf16>
    %1 = vector.shape_cast %0 : vector<2x8x32xbf16> to vector<16x32xbf16>
    %c0_2 = arith.constant 0 : index
    %c0_3 = arith.constant 0 : index
    %c0_4 = arith.constant 0 : index
    %c0_5 = arith.constant 0 : index
    %2 = vector.load %arg2[%c0_2, %c0_3, %c0_4, %c0_5] : memref<3x2x8x32xbf16, #tpu.memory_space<vmem>>, vector<3x2x8x32xbf16>
    %3 = vector.shape_cast %2 : vector<3x2x8x32xbf16> to vector<48x32xbf16>
    %c0_6 = arith.constant 0 : index
    %c0_7 = arith.constant 0 : index
    %4 = vector.load %arg3[%c0_6, %c0_7] : memref<32x32xbf16, #tpu.memory_space<vmem>>, vector<32x32xbf16>
    %cst = arith.constant dense<0.000000e+00> : vector<16x32xf32>
    %5 = tpu.matmul %1, %4, %cst {dimension_numbers = #tpu.dot_dimension_numbers<[1], [0], [0], [1], [0, 0, 1, 1], [], []>} : vector<16x32xbf16>, vector<32x32xbf16>, vector<16x32xf32> -> vector<16x32xf32>
    %c0_8 = arith.constant 0 : index
    %c0_9 = arith.constant 0 : index
    %6 = vector.load %arg6[%c0_8, %c0_9] : memref<1x32xf32, #tpu.memory_space<vmem>>, vector<1x32xf32>
    %7 = vector.broadcast %6 : vector<1x32xf32> to vector<16x32xf32>
    %8 = arith.addf %5, %7 : vector<16x32xf32>
    %9 = vector.shape_cast %8 : vector<16x32xf32> to vector<2x8x32xf32>
    %c0_10 = arith.constant 0 : index
    %c0_11 = arith.constant 0 : index
    %10 = vector.load %arg4[%c0_10, %c0_11] : memref<32x32xbf16, #tpu.memory_space<vmem>>, vector<32x32xbf16>
    %cst_12 = arith.constant dense<0.000000e+00> : vector<48x32xf32>
    %11 = tpu.matmul %3, %10, %cst_12 {dimension_numbers = #tpu.dot_dimension_numbers<[1], [0], [0], [1], [0, 0, 1, 1], [], []>} : vector<48x32xbf16>, vector<32x32xbf16>, vector<48x32xf32> -> vector<48x32xf32>
    %c0_13 = arith.constant 0 : index
    %c0_14 = arith.constant 0 : index
    %12 = vector.load %arg7[%c0_13, %c0_14] : memref<1x32xf32, #tpu.memory_space<vmem>>, vector<1x32xf32>
    %13 = vector.broadcast %12 : vector<1x32xf32> to vector<48x32xf32>
    %14 = arith.addf %11, %13 : vector<48x32xf32>
    %15 = vector.shape_cast %14 : vector<48x32xf32> to vector<3x2x8x32xf32>
    %c0_15 = arith.constant 0 : index
    %c0_16 = arith.constant 0 : index
    %16 = vector.load %arg5[%c0_15, %c0_16] : memref<32x32xbf16, #tpu.memory_space<vmem>>, vector<32x32xbf16>
    %cst_17 = arith.constant dense<0.000000e+00> : vector<48x32xf32>
    %17 = tpu.matmul %3, %16, %cst_17 {dimension_numbers = #tpu.dot_dimension_numbers<[1], [0], [0], [1], [0, 0, 1, 1], [], []>} : vector<48x32xbf16>, vector<32x32xbf16>, vector<48x32xf32> -> vector<48x32xf32>
    %c0_18 = arith.constant 0 : index
    %c0_19 = arith.constant 0 : index
    %18 = vector.load %arg8[%c0_18, %c0_19] : memref<1x32xf32, #tpu.memory_space<vmem>>, vector<1x32xf32>
    %19 = vector.broadcast %18 : vector<1x32xf32> to vector<48x32xf32>
    %20 = arith.addf %17, %19 : vector<48x32xf32>
    %21 = vector.shape_cast %20 : vector<48x32xf32> to vector<3x2x8x32xf32>
    %22 = arith.truncf %9 : vector<2x8x32xf32> to vector<2x8x32xbf16>
    %23 = vector.extract_strided_slice %15 {offsets = [0, 0, 0, 0], sizes = [1, 2, 8, 32], strides = [1, 1, 1, 1]} : vector<3x2x8x32xf32> to vector<1x2x8x32xf32>
    %24 = vector.shape_cast %23 : vector<1x2x8x32xf32> to vector<2x8x32xf32>
    %25 = arith.truncf %24 : vector<2x8x32xf32> to vector<2x8x32xbf16>
    %26 = vector.extract_strided_slice %21 {offsets = [0, 0, 0, 0], sizes = [1, 2, 8, 32], strides = [1, 1, 1, 1]} : vector<3x2x8x32xf32> to vector<1x2x8x32xf32>
    %27 = vector.shape_cast %26 : vector<1x2x8x32xf32> to vector<2x8x32xf32>
    %28 = arith.truncf %27 : vector<2x8x32xf32> to vector<2x8x32xbf16>
    "tpu.trace_start"() <{level = 10 : i32, message = "bqd,bkd->bqk"}> : () -> ()
    %cst_20 = arith.constant dense<0.000000e+00> : vector<2x8x8xf32>
    %29 = tpu.matmul %22, %25, %cst_20 {dimension_numbers = #tpu.dot_dimension_numbers<[2], [2], [1], [1], [0, 0, 0, 1, 1, 1], [0], [0]>} : vector<2x8x32xbf16>, vector<2x8x32xbf16>, vector<2x8x8xf32> -> vector<2x8x8xf32>
    "tpu.trace_stop"() : () -> ()
    %cst_21 = arith.constant dense<0xFF800000> : vector<2x8xf32>
    %30 = vector.multi_reduction <maximumf>, %29, %cst_21 [2] : vector<2x8x8xf32> to vector<2x8xf32>
    %31 = vector.shape_cast %30 : vector<2x8xf32> to vector<2x8x1xf32>
    %32 = vector.broadcast %31 : vector<2x8x1xf32> to vector<2x8x8xf32>
    %33 = arith.subf %29, %32 : vector<2x8x8xf32>
    %34 = math.exp %33 : vector<2x8x8xf32>
    %cst_22 = arith.constant dense<0.000000e+00> : vector<2x8xf32>
    %35 = vector.multi_reduction <add>, %34, %cst_22 [2] : vector<2x8x8xf32> to vector<2x8xf32>
    %36 = vector.shape_cast %35 : vector<2x8xf32> to vector<2x8x1xf32>
    %37 = tpu.reciprocal %36 {approx = true} : vector<2x8x1xf32> -> vector<2x8x1xf32>
    %38 = vector.broadcast %37 : vector<2x8x1xf32> to vector<2x8x8xf32>
    %39 = arith.mulf %34, %38 : vector<2x8x8xf32>
    %40 = arith.truncf %39 : vector<2x8x8xf32> to vector<2x8x8xbf16>
    "tpu.trace_start"() <{level = 10 : i32, message = "bqk,bkd->bqd"}> : () -> ()
    %cst_23 = arith.constant dense<0.000000e+00> : vector<2x8x32xf32>
    %41 = tpu.matmul %40, %28, %cst_23 {dimension_numbers = #tpu.dot_dimension_numbers<[2], [1], [1], [2], [0, 0, 0, 1, 1, 2], [0], [0]>} : vector<2x8x8xbf16>, vector<2x8x32xbf16>, vector<2x8x32xf32> -> vector<2x8x32xf32>
    "tpu.trace_stop"() : () -> ()
    %c0_24 = arith.constant 0 : index
    %c0_25 = arith.constant 0 : index
    %c0_26 = arith.constant 0 : index
    %42 = vector.load %arg9[%c0_24, %c0_25, %c0_26] : memref<2x8x96xf32, #tpu.memory_space<vmem>>, vector<2x8x32xf32>
    tpu.vector_store %arg9[%c0_24, %c0_25, %c0_26], %41 {strides = array<i32>} : memref<2x8x96xf32, #tpu.memory_space<vmem>>, vector<2x8x32xf32>,
    %43 = vector.extract_strided_slice %15 {offsets = [1, 0, 0, 0], sizes = [1, 2, 8, 32], strides = [1, 1, 1, 1]} : vector<3x2x8x32xf32> to vector<1x2x8x32xf32>
    %44 = vector.shape_cast %43 : vector<1x2x8x32xf32> to vector<2x8x32xf32>
    %45 = arith.truncf %44 : vector<2x8x32xf32> to vector<2x8x32xbf16>
    %46 = vector.extract_strided_slice %21 {offsets = [1, 0, 0, 0], sizes = [1, 2, 8, 32], strides = [1, 1, 1, 1]} : vector<3x2x8x32xf32> to vector<1x2x8x32xf32>
    %47 = vector.shape_cast %46 : vector<1x2x8x32xf32> to vector<2x8x32xf32>
    %48 = arith.truncf %47 : vector<2x8x32xf32> to vector<2x8x32xbf16>
    "tpu.trace_start"() <{level = 10 : i32, message = "bqd,bkd->bqk"}> : () -> ()
    %cst_27 = arith.constant dense<0.000000e+00> : vector<2x8x8xf32>
    %49 = tpu.matmul %22, %45, %cst_27 {dimension_numbers = #tpu.dot_dimension_numbers<[2], [2], [1], [1], [0, 0, 0, 1, 1, 1], [0], [0]>} : vector<2x8x32xbf16>, vector<2x8x32xbf16>, vector<2x8x8xf32> -> vector<2x8x8xf32>
    "tpu.trace_stop"() : () -> ()
    %cst_28 = arith.constant dense<0xFF800000> : vector<2x8xf32>
    %50 = vector.multi_reduction <maximumf>, %49, %cst_28 [2] : vector<2x8x8xf32> to vector<2x8xf32>
    %51 = vector.shape_cast %50 : vector<2x8xf32> to vector<2x8x1xf32>
    %52 = vector.broadcast %51 : vector<2x8x1xf32> to vector<2x8x8xf32>
    %53 = arith.subf %49, %52 : vector<2x8x8xf32>
    %54 = math.exp %53 : vector<2x8x8xf32>
    %cst_29 = arith.constant dense<0.000000e+00> : vector<2x8xf32>
    %55 = vector.multi_reduction <add>, %54, %cst_29 [2] : vector<2x8x8xf32> to vector<2x8xf32>
    %56 = vector.shape_cast %55 : vector<2x8xf32> to vector<2x8x1xf32>
    %57 = tpu.reciprocal %56 {approx = true} : vector<2x8x1xf32> -> vector<2x8x1xf32>
    %58 = vector.broadcast %57 : vector<2x8x1xf32> to vector<2x8x8xf32>
    %59 = arith.mulf %54, %58 : vector<2x8x8xf32>
    %60 = arith.truncf %59 : vector<2x8x8xf32> to vector<2x8x8xbf16>
    "tpu.trace_start"() <{level = 10 : i32, message = "bqk,bkd->bqd"}> : () -> ()
    %cst_30 = arith.constant dense<0.000000e+00> : vector<2x8x32xf32>
    %61 = tpu.matmul %60, %48, %cst_30 {dimension_numbers = #tpu.dot_dimension_numbers<[2], [1], [1], [2], [0, 0, 0, 1, 1, 2], [0], [0]>} : vector<2x8x8xbf16>, vector<2x8x32xbf16>, vector<2x8x32xf32> -> vector<2x8x32xf32>
    "tpu.trace_stop"() : () -> ()
    %c0_31 = arith.constant 0 : index
    %c0_32 = arith.constant 0 : index
    %c32 = arith.constant 32 : index
    %62 = vector.load %arg9[%c0_31, %c0_32, %c32] : memref<2x8x96xf32, #tpu.memory_space<vmem>>, vector<2x8x32xf32>
    tpu.vector_store %arg9[%c0_31, %c0_32, %c32], %61 {strides = array<i32>} : memref<2x8x96xf32, #tpu.memory_space<vmem>>, vector<2x8x32xf32>,
    %63 = vector.extract_strided_slice %15 {offsets = [2, 0, 0, 0], sizes = [1, 2, 8, 32], strides = [1, 1, 1, 1]} : vector<3x2x8x32xf32> to vector<1x2x8x32xf32>
    %64 = vector.shape_cast %63 : vector<1x2x8x32xf32> to vector<2x8x32xf32>
    %65 = arith.truncf %64 : vector<2x8x32xf32> to vector<2x8x32xbf16>
    %66 = vector.extract_strided_slice %21 {offsets = [2, 0, 0, 0], sizes = [1, 2, 8, 32], strides = [1, 1, 1, 1]} : vector<3x2x8x32xf32> to vector<1x2x8x32xf32>
    %67 = vector.shape_cast %66 : vector<1x2x8x32xf32> to vector<2x8x32xf32>
    %68 = arith.truncf %67 : vector<2x8x32xf32> to vector<2x8x32xbf16>
    "tpu.trace_start"() <{level = 10 : i32, message = "bqd,bkd->bqk"}> : () -> ()
    %cst_33 = arith.constant dense<0.000000e+00> : vector<2x8x8xf32>
    %69 = tpu.matmul %22, %65, %cst_33 {dimension_numbers = #tpu.dot_dimension_numbers<[2], [2], [1], [1], [0, 0, 0, 1, 1, 1], [0], [0]>} : vector<2x8x32xbf16>, vector<2x8x32xbf16>, vector<2x8x8xf32> -> vector<2x8x8xf32>
    "tpu.trace_stop"() : () -> ()
    %cst_34 = arith.constant dense<0xFF800000> : vector<2x8xf32>
    %70 = vector.multi_reduction <maximumf>, %69, %cst_34 [2] : vector<2x8x8xf32> to vector<2x8xf32>
    %71 = vector.shape_cast %70 : vector<2x8xf32> to vector<2x8x1xf32>
    %72 = vector.broadcast %71 : vector<2x8x1xf32> to vector<2x8x8xf32>
    %73 = arith.subf %69, %72 : vector<2x8x8xf32>
    %74 = math.exp %73 : vector<2x8x8xf32>
    %cst_35 = arith.constant dense<0.000000e+00> : vector<2x8xf32>
    %75 = vector.multi_reduction <add>, %74, %cst_35 [2] : vector<2x8x8xf32> to vector<2x8xf32>
    %76 = vector.shape_cast %75 : vector<2x8xf32> to vector<2x8x1xf32>
    %77 = tpu.reciprocal %76 {approx = true} : vector<2x8x1xf32> -> vector<2x8x1xf32>
    %78 = vector.broadcast %77 : vector<2x8x1xf32> to vector<2x8x8xf32>
    %79 = arith.mulf %74, %78 : vector<2x8x8xf32>
    %80 = arith.truncf %79 : vector<2x8x8xf32> to vector<2x8x8xbf16>
    "tpu.trace_start"() <{level = 10 : i32, message = "bqk,bkd->bqd"}> : () -> ()
    %cst_36 = arith.constant dense<0.000000e+00> : vector<2x8x32xf32>
    %81 = tpu.matmul %80, %68, %cst_36 {dimension_numbers = #tpu.dot_dimension_numbers<[2], [1], [1], [2], [0, 0, 0, 1, 1, 2], [0], [0]>} : vector<2x8x8xbf16>, vector<2x8x32xbf16>, vector<2x8x32xf32> -> vector<2x8x32xf32>
    "tpu.trace_stop"() : () -> ()
    %c0_37 = arith.constant 0 : index
    %c0_38 = arith.constant 0 : index
    %c64 = arith.constant 64 : index
    %82 = vector.load %arg9[%c0_37, %c0_38, %c64] : memref<2x8x96xf32, #tpu.memory_space<vmem>>, vector<2x8x32xf32>
    tpu.vector_store %arg9[%c0_37, %c0_38, %c64], %81 {strides = array<i32>} : memref<2x8x96xf32, #tpu.memory_space<vmem>>, vector<2x8x32xf32>,
    return
  }
  func.func @transform_0(%arg0: i32) -> (i32, i32, i32) {
    %c0_i32 = arith.constant 0 : i32
    %c0_i32_0 = arith.constant 0 : i32
    %c0_i32_1 = arith.constant 0 : i32
    return %arg0, %c0_i32, %c0_i32_0 : i32, i32, i32
  }
  func.func @transform_1(%arg0: i32) -> (i32, i32, i32, i32) {
    %c0_i32 = arith.constant 0 : i32
    %c0_i32_0 = arith.constant 0 : i32
    %c0_i32_1 = arith.constant 0 : i32
    %c0_i32_2 = arith.constant 0 : i32
    return %c0_i32, %arg0, %c0_i32_0, %c0_i32_1 : i32, i32, i32, i32
  }
  func.func @transform_2(%arg0: i32) -> (i32, i32) {
    %c0_i32 = arith.constant 0 : i32
    %c0_i32_0 = arith.constant 0 : i32
    %c0_i32_1 = arith.constant 0 : i32
    return %c0_i32, %c0_i32_0 : i32, i32
  }
  func.func @transform_3(%arg0: i32) -> (i32, i32) {
    %c0_i32 = arith.constant 0 : i32
    %c0_i32_0 = arith.constant 0 : i32
    %c0_i32_1 = arith.constant 0 : i32
    return %c0_i32, %c0_i32_0 : i32, i32
  }
  func.func @transform_4(%arg0: i32) -> (i32, i32) {
    %c0_i32 = arith.constant 0 : i32
    %c0_i32_0 = arith.constant 0 : i32
    %c0_i32_1 = arith.constant 0 : i32
    return %c0_i32, %c0_i32_0 : i32, i32
  }
  func.func @transform_5(%arg0: i32) -> (i32, i32) {
    %c0_i32 = arith.constant 0 : i32
    %c0_i32_0 = arith.constant 0 : i32
    %c0_i32_1 = arith.constant 0 : i32
    return %c0_i32, %c0_i32_0 : i32, i32
  }
  func.func @transform_6(%arg0: i32) -> (i32, i32) {
    %c0_i32 = arith.constant 0 : i32
    %c0_i32_0 = arith.constant 0 : i32
    %c0_i32_1 = arith.constant 0 : i32
    return %c0_i32, %c0_i32_0 : i32, i32
  }
  func.func @transform_7(%arg0: i32) -> (i32, i32) {
    %c0_i32 = arith.constant 0 : i32
    %c0_i32_0 = arith.constant 0 : i32
    %c0_i32_1 = arith.constant 0 : i32
    return %c0_i32, %c0_i32_0 : i32, i32
  }
  func.func @transform_8(%arg0: i32) -> (i32, i32, i32) {
    %c0_i32 = arith.constant 0 : i32
    %c0_i32_0 = arith.constant 0 : i32
    %c0_i32_1 = arith.constant 0 : i32
    return %arg0, %c0_i32, %c0_i32_0 : i32, i32, i32
  }
}

</mosaic_0001>

<llo_original>
// kernel: tpu_custom_call.1
$region0: #{tpu_custom_call.1}
  #allocation0 [shape = 'u32[]', space=smem, size = 0x4, offset = 0x4, fixed_abs, tag = 'smem constant byte address 0x4 - core index']
  #allocation1 [shape = 'u32[144,128]{1,0:T(1,128)}', space=vmem, size = 0x12000, scoped, tag = 'internal scratch']
  #allocation12 [shape = 's32[]', space=sflag, size = 0x4, offset = 0, fixed_abs, tag = 'sflag constant byte address 0x0 - dummy sync flag']
  %s0 = inlined_call_operand.hbm [shape: bf16[4,8,32], index: 0, kind: input, shape index: {}]
  %s1 = inlined_call_operand.hbm [shape: bf16[3,4,8,32], index: 1, kind: input, shape index: {}]
  %s2 = inlined_call_operand.hbm [shape: bf16[32,32], index: 2, kind: input, shape index: {}]
  %s3 = inlined_call_operand.hbm [shape: bf16[32,32], index: 3, kind: input, shape index: {}]
  %s4 = inlined_call_operand.hbm [shape: bf16[32,32], index: 4, kind: input, shape index: {}]
  %s5 = inlined_call_operand.vmem [shape: f32[1,32], index: 5, kind: input, shape index: {}]
  %s6 = inlined_call_operand.vmem [shape: f32[1,32], index: 6, kind: input, shape index: {}]
  %s7 = inlined_call_operand.vmem [shape: f32[1,32], index: 7, kind: input, shape index: {}]
  %s8 = inlined_call_operand.hbm [shape: f32[4,8,96], index: 8, kind: output, shape index: {}]
  %s9 = sld [smem:[#allocation0]]
  $region85: #{tpu_custom_call.1} parent=0
    _
  %s11 = ssub.s32 1, %s9
  %s12 = scalar_select 0, %s11, %s9
  $region1: #{tpu_custom_call.1} parent=0
    #allocation2 [shape = 'u8[8192]{0}', space=vmem, size = 0x2000, scoped, tag = 'input window, operand 0']
    #allocation3 [shape = 's32[2]{0}', space=sflag, size = 0x8, scoped, tag = 'scoped memory for tpu_custom_call.1']
    #allocation4 [shape = 's32[2]{0}', space=sflag, size = 0x8, scoped, tag = 'scoped memory for tpu_custom_call.1']
    #allocation5 [shape = 'u8[24576]{0}', space=vmem, size = 0x6000, scoped, tag = 'input window, operand 1']
    #allocation6 [shape = 's32[2]{0}', space=sflag, size = 0x8, scoped, tag = 'scoped memory for tpu_custom_call.1']
    #allocation7 [shape = 'u8[8192]{0}', space=vmem, size = 0x2000, scoped, tag = 'input window, operand 2, single buffered']
    #allocation8 [shape = 'u8[8192]{0}', space=vmem, size = 0x2000, scoped, tag = 'input window, operand 3, single buffered']
    #allocation9 [shape = 's32[1]{0}', space=sflag, size = 0x4, scoped, tag = 'scoped memory for tpu_custom_call.1']
    #allocation10 [shape = 'u8[8192]{0}', space=vmem, size = 0x2000, scoped, tag = 'input window, operand 4, single buffered']
    #allocation11 [shape = 'u8[16384]{0}', space=vmem, size = 0x4000, scoped, tag = 'output window, operand 0']
    %13 = vsyncpa [#allocation3], 0
    %s14 = scalar_lea.sflag [#allocation3], 1
    %15 = vsyncpa %s14, 0
    %16 = vsyncpa [#allocation6], 0
    %s17 = scalar_lea.sflag [#allocation6], 1
    %18 = vsyncpa %s17, 0
    %19 = vsyncpa [#allocation9], 0
    %20 = vsyncpa [#allocation4], 0
    %s21 = scalar_lea.sflag [#allocation4], 1
    %22 = vsyncpa %s21, 0
    loop: start=0, step=1, limit=4
    $region2: #{tpu_custom_call.1} parent=1 // loop_pre_header
      _
    $region3: #{tpu_custom_call.1} parent=1 // loop_header
      %s24 = sphi 0, %s28
      %p25 = scmp.ge.s32.totalorder %s24, 4
      %s34 = sphi 0, %s36
      %s37 = sphi 0, %s34
      %s38 = sphi 0, %s37
      %s54 = sphi 0, %s38
      %s60 = sphi 0, %s62
      %s63 = sphi 0, %s60
      %s64 = sphi 0, %s63
      %s80 = sphi 0, %s64
      %s84 = sphi 0, %s84
      %s86 = sphi 0, %s84
      %s87 = sphi 0, %s86
      %s101 = sphi 0, %s87
      %s105 = sphi 0, %s105
      %s107 = sphi 0, %s105
      %s108 = sphi 0, %s107
      %s122 = sphi 0, %s108
      %s126 = sphi 0, %s126
      %s128 = sphi 0, %s126
      %s129 = sphi 0, %s128
      %s143 = sphi 0, %s129
      %s147 = sphi 0, %s147
      %s149 = sphi 0, %s147
      %s150 = sphi 0, %s149
      %s164 = sphi 0, %s150
      %s168 = sphi 0, %s168
      %s170 = sphi 0, %s168
      %s171 = sphi 0, %s170
      %s185 = sphi 0, %s171
      %s189 = sphi 0, %s189
      %s191 = sphi 0, %s189
      %s192 = sphi 0, %s191
      %s206 = sphi 0, %s192
      %s212 = sphi 0, %s214
      %s215 = sphi 0, %s212
      %s216 = sphi 0, %s215
      %s232 = sphi 0, %s216
    $region4: #{tpu_custom_call.1} parent=1 // loop_header_branch
      %27 = sbr.rel (%p25) target = $region8
    $region5: #{tpu_custom_call.1} parent=1 // loop_body
      %s29 = ssub.s32 %s24, 1
      %s30 = ssub.s32 %s24, 2
      %s31 = sadd.s32 %s24, 1
      %s32 = ssub.s32 %s24, %s31
      %p33 = scmp.eq.s32.totalorder %s32, 0
      %s35 = sadd.s32 %s34, 1
      %s36 = scalar_select %p33, %s34, %s35
      %p39 = pneg %p33
      %p40 = scmp.eq.s32.totalorder %s24, 1
      %p41 = por %p39, %p40
      %p42 = scmp.ne.s32.totalorder %s34, %s37
      %p43 = scmp.eq.s32.totalorder %s24, 0
      %p44 = por %p42, %p43
      %p45 = scmp.ne.s32.totalorder %s34, %s37
      %p46 = scmp.eq.s32.totalorder %s29, 1
      %p47 = por %p45, %p46
      %p48 = scmp.ne.s32.totalorder %s37, %s38
      %p49 = scmp.eq.s32.totalorder %s29, 0
      %p50 = por %p48, %p49
      %p51 = scmp.ne.s32.totalorder %s37, %s38
      %p52 = scmp.eq.s32.totalorder %s30, 1
      %p53 = por %p51, %p52
      %p55 = scmp.ne.s32.totalorder %s38, %s54
      %p56 = scmp.eq.s32.totalorder %s30, 0
      %p57 = por %p55, %p56
      %s58 = ssub.s32 %s24, %s31
      %p59 = scmp.eq.s32.totalorder %s58, 0
      %s61 = sadd.s32 %s60, 1
      %s62 = scalar_select %p59, %s60, %s61
      %p65 = pneg %p59
      %p66 = scmp.eq.s32.totalorder %s24, 1
      %p67 = por %p65, %p66
      %p68 = scmp.ne.s32.totalorder %s60, %s63
      %p69 = scmp.eq.s32.totalorder %s24, 0
      %p70 = por %p68, %p69
      %p71 = scmp.ne.s32.totalorder %s60, %s63
      %p72 = scmp.eq.s32.totalorder %s29, 1
      %p73 = por %p71, %p72
      %p74 = scmp.ne.s32.totalorder %s63, %s64
      %p75 = scmp.eq.s32.totalorder %s29, 0
      %p76 = por %p74, %p75
      %p77 = scmp.ne.s32.totalorder %s63, %s64
      %p78 = scmp.eq.s32.totalorder %s30, 1
      %p79 = por %p77, %p78
      %p81 = scmp.ne.s32.totalorder %s64, %s80
      %p82 = scmp.eq.s32.totalorder %s30, 0
      %p83 = por %p81, %p82
      %s85 = sadd.s32 %s84, 1
      %p88 = scmp.eq.s32.totalorder %s24, 1
      %p89 = scmp.ne.s32.totalorder %s84, %s86
      %p90 = scmp.eq.s32.totalorder %s24, 0
      %p91 = por %p89, %p90
      %p92 = scmp.ne.s32.totalorder %s84, %s86
      %p93 = scmp.eq.s32.totalorder %s29, 1
      %p94 = por %p92, %p93
      %p95 = scmp.ne.s32.totalorder %s86, %s87
      %p96 = scmp.eq.s32.totalorder %s29, 0
      %p97 = por %p95, %p96
      %p98 = scmp.ne.s32.totalorder %s86, %s87
      %p99 = scmp.eq.s32.totalorder %s30, 1
      %p100 = por %p98, %p99
      %p102 = scmp.ne.s32.totalorder %s87, %s101
      %p103 = scmp.eq.s32.totalorder %s30, 0
      %p104 = por %p102, %p103
      %s106 = sadd.s32 %s105, 1
      %p109 = scmp.eq.s32.totalorder %s24, 1
      %p110 = scmp.ne.s32.totalorder %s105, %s107
      %p111 = scmp.eq.s32.totalorder %s24, 0
      %p112 = por %p110, %p111
      %p113 = scmp.ne.s32.totalorder %s105, %s107
      %p114 = scmp.eq.s32.totalorder %s29, 1
      %p115 = por %p113, %p114
      %p116 = scmp.ne.s32.totalorder %s107, %s108
      %p117 = scmp.eq.s32.totalorder %s29, 0
      %p118 = por %p116, %p117
      %p119 = scmp.ne.s32.totalorder %s107, %s108
      %p120 = scmp.eq.s32.totalorder %s30, 1
      %p121 = por %p119, %p120
      %p123 = scmp.ne.s32.totalorder %s108, %s122
      %p124 = scmp.eq.s32.totalorder %s30, 0
      %p125 = por %p123, %p124
      %s127 = sadd.s32 %s126, 1
      %p130 = scmp.eq.s32.totalorder %s24, 1
      %p131 = scmp.ne.s32.totalorder %s126, %s128
      %p132 = scmp.eq.s32.totalorder %s24, 0
      %p133 = por %p131, %p132
      %p134 = scmp.ne.s32.totalorder %s126, %s128
      %p135 = scmp.eq.s32.totalorder %s29, 1
      %p136 = por %p134, %p135
      %p137 = scmp.ne.s32.totalorder %s128, %s129
      %p138 = scmp.eq.s32.totalorder %s29, 0
      %p139 = por %p137, %p138
      %p140 = scmp.ne.s32.totalorder %s128, %s129
      %p141 = scmp.eq.s32.totalorder %s30, 1
      %p142 = por %p140, %p141
      %p144 = scmp.ne.s32.totalorder %s129, %s143
      %p145 = scmp.eq.s32.totalorder %s30, 0
      %p146 = por %p144, %p145
      %s148 = sadd.s32 %s147, 1
      %p151 = scmp.eq.s32.totalorder %s24, 1
      %p152 = scmp.ne.s32.totalorder %s147, %s149
      %p153 = scmp.eq.s32.totalorder %s24, 0
      %p154 = por %p152, %p153
      %p155 = scmp.ne.s32.totalorder %s147, %s149
      %p156 = scmp.eq.s32.totalorder %s29, 1
      %p157 = por %p155, %p156
      %p158 = scmp.ne.s32.totalorder %s149, %s150
      %p159 = scmp.eq.s32.totalorder %s29, 0
      %p160 = por %p158, %p159
      %p161 = scmp.ne.s32.totalorder %s149, %s150
      %p162 = scmp.eq.s32.totalorder %s30, 1
      %p163 = por %p161, %p162
      %p165 = scmp.ne.s32.totalorder %s150, %s164
      %p166 = scmp.eq.s32.totalorder %s30, 0
      %p167 = por %p165, %p166
      %s169 = sadd.s32 %s168, 1
      %p172 = scmp.eq.s32.totalorder %s24, 1
      %p173 = scmp.ne.s32.totalorder %s168, %s170
      %p174 = scmp.eq.s32.totalorder %s24, 0
      %p175 = por %p173, %p174
      %p176 = scmp.ne.s32.totalorder %s168, %s170
      %p177 = scmp.eq.s32.totalorder %s29, 1
      %p178 = por %p176, %p177
      %p179 = scmp.ne.s32.totalorder %s170, %s171
      %p180 = scmp.eq.s32.totalorder %s29, 0
      %p181 = por %p179, %p180
      %p182 = scmp.ne.s32.totalorder %s170, %s171
      %p183 = scmp.eq.s32.totalorder %s30, 1
      %p184 = por %p182, %p183
      %p186 = scmp.ne.s32.totalorder %s171, %s185
      %p187 = scmp.eq.s32.totalorder %s30, 0
      %p188 = por %p186, %p187
      %s190 = sadd.s32 %s189, 1
      %p193 = scmp.eq.s32.totalorder %s24, 1
      %p194 = scmp.ne.s32.totalorder %s189, %s191
      %p195 = scmp.eq.s32.totalorder %s24, 0
      %p196 = por %p194, %p195
      %p197 = scmp.ne.s32.totalorder %s189, %s191
      %p198 = scmp.eq.s32.totalorder %s29, 1
      %p199 = por %p197, %p198
      %p200 = scmp.ne.s32.totalorder %s191, %s192
      %p201 = scmp.eq.s32.totalorder %s29, 0
      %p202 = por %p200, %p201
      %p203 = scmp.ne.s32.totalorder %s191, %s192
      %p204 = scmp.eq.s32.totalorder %s30, 1
      %p205 = por %p203, %p204
      %p207 = scmp.ne.s32.totalorder %s192, %s206
      %p208 = scmp.eq.s32.totalorder %s30, 0
      %p209 = por %p207, %p208
      %s210 = ssub.s32 %s24, %s31
      %p211 = scmp.eq.s32.totalorder %s210, 0
      %s213 = sadd.s32 %s212, 1
      %s214 = scalar_select %p211, %s212, %s213
      %p217 = pneg %p211
      %p218 = scmp.eq.s32.totalorder %s24, 1
      %p219 = por %p217, %p218
      %p220 = scmp.ne.s32.totalorder %s212, %s215
      %p221 = scmp.eq.s32.totalorder %s24, 0
      %p222 = por %p220, %p221
      %p223 = scmp.ne.s32.totalorder %s212, %s215
      %p224 = scmp.eq.s32.totalorder %s29, 1
      %p225 = por %p223, %p224
      %p226 = scmp.ne.s32.totalorder %s215, %s216
      %p227 = scmp.eq.s32.totalorder %s29, 0
      %p228 = por %p226, %p227
      %p229 = scmp.ne.s32.totalorder %s215, %s216
      %p230 = scmp.eq.s32.totalorder %s30, 1
      %p231 = por %p229, %p230
      %p233 = scmp.ne.s32.totalorder %s216, %s232
      %p234 = scmp.eq.s32.totalorder %s30, 0
      %p235 = por %p233, %p234
      %p236 = scmp.le.s32.totalorder 1, %s24
      %p237 = scmp.lt.s32.totalorder %s24, 3
      %p238 = pnand %p236, %p237
      %p239 = pneg %p238
      // Predicated region
      $region9: #{tpu_custom_call.1} parent=5 // pred_check
        _
      $region10: #{tpu_custom_call.1} parent=5 // pred_check_branch
        %241 = sbr.rel (%p238) target = $region12
      $region11: #{tpu_custom_call.1} parent=5 // pred_region
        %s242 = ssub.s32 %s24, 1
        // Predicated region
        $region13: #{tpu_custom_call.1} parent=11 // pred_check
          %p243 = pneg %p97
        $region14: #{tpu_custom_call.1} parent=11 // pred_check_branch
          %245 = sbr.rel (%p243) target = $region16
        $region15: #{tpu_custom_call.1} parent=11 // pred_region
          %s247 = ssub.s32 256, 256
          %248 = vsyncadd [#allocation6], %s247
          %s249 = sshll.u32 [#allocation7], 4
          %s250 = int_to_ptr.vmem [resolvable:$true] %s249
          %255 = dma.hbm_to_vmem [thread:$0]  %s2, 256, %s250, [#allocation6], 64, 64, 4
        $region16: #{tpu_custom_call.1} parent=11 // pred_fallthru
          _
        // Predicated region
        $region17: #{tpu_custom_call.1} parent=11 // pred_check
          %p256 = pneg %p118
        $region18: #{tpu_custom_call.1} parent=11 // pred_check_branch
          %258 = sbr.rel (%p256) target = $region20
        $region19: #{tpu_custom_call.1} parent=11 // pred_region
          %s260 = ssub.s32 256, 256
          %261 = vsyncadd [#allocation9], %s260
          %s262 = sshll.u32 [#allocation8], 4
          %s263 = int_to_ptr.vmem [resolvable:$true] %s262
          %268 = dma.hbm_to_vmem [thread:$0]  %s3, 256, %s263, [#allocation9], 64, 64, 4
        $region20: #{tpu_custom_call.1} parent=11 // pred_fallthru
          _
        // Predicated region
        $region21: #{tpu_custom_call.1} parent=11 // pred_check
          %p269 = pneg %p139
        $region22: #{tpu_custom_call.1} parent=11 // pred_check_branch
          %271 = sbr.rel (%p269) target = $region24
        $region23: #{tpu_custom_call.1} parent=11 // pred_region
          %s273 = ssub.s32 256, 256
          %274 = vsyncadd [#allocation9], %s273
          %s275 = sshll.u32 [#allocation10], 4
          %s276 = int_to_ptr.vmem [resolvable:$true] %s275
          %281 = dma.hbm_to_vmem [thread:$0]  %s4, 256, %s276, [#allocation9], 64, 64, 4
        $region24: #{tpu_custom_call.1} parent=11 // pred_fallthru
          _
        // Predicated region
        $region25: #{tpu_custom_call.1} parent=11 // pred_check
          %p282 = pneg %p160
        $region26: #{tpu_custom_call.1} parent=11 // pred_check_branch
          %284 = sbr.rel (%p282) target = $region28
        $region27: #{tpu_custom_call.1} parent=11 // pred_region
          _
        $region28: #{tpu_custom_call.1} parent=11 // pred_fallthru
          _
        // Predicated region
        $region29: #{tpu_custom_call.1} parent=11 // pred_check
          %p285 = pneg %p181
        $region30: #{tpu_custom_call.1} parent=11 // pred_check_branch
          %287 = sbr.rel (%p285) target = $region32
        $region31: #{tpu_custom_call.1} parent=11 // pred_region
          _
        $region32: #{tpu_custom_call.1} parent=11 // pred_fallthru
          _
        // Predicated region
        $region33: #{tpu_custom_call.1} parent=11 // pred_check
          %p288 = pneg %p202
        $region34: #{tpu_custom_call.1} parent=11 // pred_check_branch
          %290 = sbr.rel (%p288) target = $region36
        $region35: #{tpu_custom_call.1} parent=11 // pred_region
          _
        $region36: #{tpu_custom_call.1} parent=11 // pred_fallthru
          _
      $region12: #{tpu_custom_call.1} parent=5 // pred_fallthru
        _
      %p291 = scmp.lt.s32.totalorder %s24, 2
      // Predicated region
      $region37: #{tpu_custom_call.1} parent=5 // pred_check
        %p292 = pneg %p291
      $region38: #{tpu_custom_call.1} parent=5 // pred_check_branch
        %294 = sbr.rel (%p292) target = $region40
      $region39: #{tpu_custom_call.1} parent=5 // pred_region
        // Predicated region
        $region41: #{tpu_custom_call.1} parent=39 // pred_check
          %p295 = pneg %p44
        $region42: #{tpu_custom_call.1} parent=39 // pred_check_branch
          %297 = sbr.rel (%p295) target = $region44
        $region43: #{tpu_custom_call.1} parent=39 // pred_region
          %s298 = sand.u32 %s34, 1
          %s299 = scalar_lea.sflag [#allocation3], %s298
          %s300 = sand.u32 %s34, 1
          %s301 = smul.addr %s300, 8
          %s302 = scalar_lea.vmem [#allocation2], %s301
          %s303 = smul.u32 2, %s24
          %s305 = ssub.s32 128, 128
          %306 = vsyncadd %s299, %s305
          %s307 = smul.addr %s303, 64
          %s308 = scalar_lea.hbm %s0, %s307
          %s309 = sshll.u32 %s302, 4
          %s310 = int_to_ptr.vmem [resolvable:$true] %s309
          %315 = dma.hbm_to_vmem [thread:$0]  %s308, 128, %s310, %s299, 64, 64, 4
        $region44: #{tpu_custom_call.1} parent=39 // pred_fallthru
          _
        // Predicated region
        $region45: #{tpu_custom_call.1} parent=39 // pred_check
          %p316 = pneg %p70
        $region46: #{tpu_custom_call.1} parent=39 // pred_check_branch
          %318 = sbr.rel (%p316) target = $region48
        $region47: #{tpu_custom_call.1} parent=39 // pred_region
          #allocation13 [shape = 'u32[6]{0}', space=smem, size = 0x18, scoped, tag = 'DMA stride descriptor']
          %s319 = sand.u32 %s24, 1
          %s320 = scalar_lea.sflag [#allocation6], %s319
          %s321 = sand.u32 %s60, 1
          %s322 = smul.addr %s321, 24
          %s323 = scalar_lea.vmem [#allocation5], %s322
          %s324 = smul.u32 2, %s24
          %s326 = ssub.s32 384, 384
          %327 = vsyncadd %s320, %s326
          %s328 = smul.addr %s324, 64
          %s329 = scalar_lea.hbm %s1, %s328
          %s331 = sshll.u32 1, 14
          %s332 = sxor.u32 4294967295, %s331
          %s334 = sld [smem:[#allocation0]]
          %s335 = sadd.s32 2, %s334
          %s337 = sshll.u32 7, 26
          %s338 = sxor.u32 4294967295, %s337
          %s339 = sand.u32 0, %s338
          %s340 = sshll.u32 %s335, 26
          %s341 = sor.u32 %s339, %s340
          %s342 = sshll.u32 %s323, 4
          %s343 = int_to_ptr.vmem [resolvable:$true] %s342
          %349 = sst [smem:[#allocation13]] 256
          %s350 = scalar_lea.smem [#allocation13], 1
          %351 = sst [smem:[%s350]] 128
          %s352 = scalar_lea.smem [#allocation13], 2
          %353 = sst [smem:[%s352]] 2
          %s354 = scalar_lea.smem [#allocation13], 3
          %355 = sst [smem:[%s354]] 64
          %s356 = scalar_lea.smem [#allocation13], 4
          %357 = sst [smem:[%s356]] 64
          %s358 = scalar_lea.smem [#allocation13], 5
          %359 = sst [smem:[%s358]] 4
          %361 = dma.general %s329, 384, %s343, %s320, [#allocation12], [#allocation13], %s341, 0
        $region48: #{tpu_custom_call.1} parent=39 // pred_fallthru
          _
      $region40: #{tpu_custom_call.1} parent=5 // pred_fallthru
        _
      %p362 = scmp.le.s32.totalorder 1, %s24
      %p363 = scmp.lt.s32.totalorder %s24, 3
      %p364 = pnand %p362, %p363
      %p365 = pneg %p364
      // Predicated region
      $region49: #{tpu_custom_call.1} parent=5 // pred_check
        _
      $region50: #{tpu_custom_call.1} parent=5 // pred_check_branch
        %367 = sbr.rel (%p364) target = $region52
      $region51: #{tpu_custom_call.1} parent=5 // pred_region
        %s368 = ssub.s32 %s24, 1
        %s369 = sand.u32 %s37, 1
        %s370 = scalar_lea.sflag [#allocation3], %s369
        %s371 = sand.u32 %s37, 1
        %s372 = smul.addr %s371, 8
        %s373 = scalar_lea.vmem [#allocation2], %s372
        // Predicated region
        $region53: #{tpu_custom_call.1} parent=51 // pred_check
          %p374 = pneg %p50
        $region54: #{tpu_custom_call.1} parent=51 // pred_check_branch
          %376 = sbr.rel (%p374) target = $region56
        $region55: #{tpu_custom_call.1} parent=51 // pred_region
          %377 = dma.done %s370, 128
        $region56: #{tpu_custom_call.1} parent=51 // pred_fallthru
          _
        %s378 = sand.u32 %s29, 1
        %s379 = scalar_lea.sflag [#allocation6], %s378
        %s380 = sand.u32 %s63, 1
        %s381 = smul.addr %s380, 24
        %s382 = scalar_lea.vmem [#allocation5], %s381
        // Predicated region
        $region57: #{tpu_custom_call.1} parent=51 // pred_check
          %p383 = pneg %p76
        $region58: #{tpu_custom_call.1} parent=51 // pred_check_branch
          %385 = sbr.rel (%p383) target = $region60
        $region59: #{tpu_custom_call.1} parent=51 // pred_region
          %386 = dma.done %s379, 384
        $region60: #{tpu_custom_call.1} parent=51 // pred_fallthru
          _
        // Predicated region
        $region61: #{tpu_custom_call.1} parent=51 // pred_check
          %p387 = pneg %p97
        $region62: #{tpu_custom_call.1} parent=51 // pred_check_branch
          %389 = sbr.rel (%p387) target = $region64
        $region63: #{tpu_custom_call.1} parent=51 // pred_region
          %390 = dma.done [#allocation6], 256
        $region64: #{tpu_custom_call.1} parent=51 // pred_fallthru
          _
        // Predicated region
        $region65: #{tpu_custom_call.1} parent=51 // pred_check
          %p391 = pneg %p118
        $region66: #{tpu_custom_call.1} parent=51 // pred_check_branch
          %393 = sbr.rel (%p391) target = $region68
        $region67: #{tpu_custom_call.1} parent=51 // pred_region
          %394 = dma.done [#allocation9], 256
        $region68: #{tpu_custom_call.1} parent=51 // pred_fallthru
          _
        // Predicated region
        $region69: #{tpu_custom_call.1} parent=51 // pred_check
          %p395 = pneg %p139
        $region70: #{tpu_custom_call.1} parent=51 // pred_check_branch
          %397 = sbr.rel (%p395) target = $region72
        $region71: #{tpu_custom_call.1} parent=51 // pred_region
          %398 = dma.done [#allocation9], 256
        $region72: #{tpu_custom_call.1} parent=51 // pred_fallthru
          _
        %s399 = sand.u32 %s37, 1
        %s400 = scalar_lea.sflag [#allocation3], %s399
        %s401 = sand.u32 %s37, 1
        %s402 = smul.addr %s401, 8
        %s403 = scalar_lea.vmem [#allocation2], %s402
        %p404 = pneg %p50
        %p405 = pneg %p47
        %s406 = sand.u32 %s29, 1
        %s407 = scalar_lea.sflag [#allocation6], %s406
        %s408 = sand.u32 %s63, 1
        %s409 = smul.addr %s408, 24
        %s410 = scalar_lea.vmem [#allocation5], %s409
        %p411 = pneg %p76
        %p412 = pneg %p73
        %p413 = pneg %p97
        %p414 = pneg %p94
        %p415 = pneg %p118
        %p416 = pneg %p115
        %p417 = pneg %p139
        %p418 = pneg %p136
        %p419 = pneg %p160
        %p420 = pneg %p157
        %p421 = pneg %p181
        %p422 = pneg %p178
        %p423 = pneg %p202
        %p424 = pneg %p199
        %p425 = pneg %p228
        %p426 = pneg %p225
        %s427 = sand.u32 %s215, 1
        %s428 = scalar_lea.sflag [#allocation4], %s427
        %s429 = sand.u32 %s215, 1
        %s430 = smul.addr %s429, 16
        %s431 = scalar_lea.vmem [#allocation11], %s430
        %s432 = smul.u32 2, %s29
        %s433 = smul.u32 2, %s29
        %s434 = smul.u32 2, %s29
        %v436 = vld [vmem:[%s373] sm:$0xf]
        %v437 = vld [vmem:[%s373 + $0x4] sm:$0xf]
        %v438 = vld [vmem:[%s382] sm:$0xf]
        %v439 = vld [vmem:[%s382 + $0x4] sm:$0xf]
        %v440 = vld [vmem:[%s382 + $0x8] sm:$0xf]
        %v441 = vld [vmem:[%s382 + $0xc] sm:$0xf]
        %v442 = vld [vmem:[%s382 + $0x10] sm:$0xf]
        %v443 = vld [vmem:[%s382 + $0x14] sm:$0xf]
        %v444 = vld [vmem:[#allocation7] sm:$0xf]
        %v445 = vld [vmem:[#allocation7 + $0x4] sm:$0xf]
        %v446 = vld [vmem:[#allocation7 + $0x8] sm:$0xf]
        %v447 = vld [vmem:[#allocation7 + $0xc] sm:$0xf]
        %v448 = vld [vmem:[%s5] sm:$0x1]
        %v450 = vlaneseq
        %v451 = vshrl.u32 %v450, 7
        %v452 = vsub.s32 0, %v451
        %v453 = vrot.slane %v448, %v452
        %v457 = vunpack.c.l.b16 %v436
        %v458 = vunpack.c.l.b16 %v437
        %v459 = vpack.c.b16 %v458, %v457
        %v464 = vunpack.c.l.b16 %v444
        %v465 = vunpack.c.l.b16 %v445
        %v466 = vunpack.c.l.b16 %v446
        %v467 = vunpack.c.l.b16 %v447
        %v468 = vpack.c.b16 %v465, %v464
        %v469 = vpack.c.b16 %v467, %v466
        %vm472 = vcmask 261120
        %v474 = vsel %vm472, %v459, 0
        %476 = vmatprep.subr.bf16.mxu0 0
        %477 = vmatpush1.bf16.msra.mxu0 %v468
        %478 = vmatprep.subr.bf16.mxu0 0
        %479 = vmatpush1.bf16.msra.mxu0 %v469
        %480 = vmatprep.subr.bf16.mxu0 0
        %481 = vmatpush1.bf16.msra.mxu0 0
        %482 = vmatprep.subr.bf16.mxu0 0
        %483 = vmatpush1.bf16.msra.mxu0 0
        %484 = vmatprep.subr.bf16.mxu0 0
        %485 = vmatpush1.bf16.msra.mxu0 0
        %486 = vmatprep.subr.bf16.mxu0 0
        %487 = vmatpush1.bf16.msra.mxu0 0
        %488 = vmatprep.subr.bf16.mxu0 0
        %489 = vmatpush1.bf16.msra.mxu0 0
        %490 = vmatprep.subr.bf16.mxu0 0
        %491 = vmatpush1.bf16.msra.mxu0 0
        %492 = vmatprep.subr.bf16.mxu0 0
        %493 = vmatpush1.bf16.msra.mxu0 0
        %494 = vmatprep.subr.bf16.mxu0 0
        %495 = vmatpush1.bf16.msra.mxu0 0
        %496 = vmatprep.subr.bf16.mxu0 0
        %497 = vmatpush1.bf16.msra.mxu0 0
        %498 = vmatprep.subr.bf16.mxu0 0
        %499 = vmatpush1.bf16.msra.mxu0 0
        %500 = vmatprep.subr.bf16.mxu0 0
        %501 = vmatpush1.bf16.msra.mxu0 0
        %502 = vmatprep.subr.bf16.mxu0 0
        %503 = vmatpush1.bf16.msra.mxu0 0
        %504 = vmatprep.subr.bf16.mxu0 0
        %505 = vmatpush1.bf16.msra.mxu0 0
        %506 = vmatprep.subr.bf16.mxu0 0
        %507 = vmatpush1.bf16.msra.mxu0 0
        %508 = vmatprep.mubr.bf16.mxu0 0
        %509 = vmatmul.mubr.bf16.gmra.mrb[0].mxu0 %v474
        %v510 = vpop.f32.mrb[0].mxu0
        %v511 = vadd.f32 %v453, %v510
        %v512 = vpop.f32.mrb[0].mxu0
        %v513 = vpop.f32.mrb[0].mxu0
        %v514 = vadd.f32 %v453, %v513
        %v515 = vpop.f32.mrb[0].mxu0
        %516 = vdwg.mxu0
        %v517 = vld [vmem:[#allocation8] sm:$0xf]
        %v518 = vld [vmem:[#allocation8 + $0x4] sm:$0xf]
        %v519 = vld [vmem:[#allocation8 + $0x8] sm:$0xf]
        %v520 = vld [vmem:[#allocation8 + $0xc] sm:$0xf]
        %v521 = vld [vmem:[%s6] sm:$0x1]
        %v523 = vlaneseq
        %v524 = vshrl.u32 %v523, 7
        %v525 = vsub.s32 0, %v524
        %v526 = vrot.slane %v521, %v525
        %v534 = vunpack.c.l.b16 %v438
        %v535 = vunpack.c.l.b16 %v439
        %v536 = vunpack.c.l.b16 %v440
        %v537 = vunpack.c.l.b16 %v441
        %v538 = vunpack.c.l.b16 %v442
        %v539 = vunpack.c.l.b16 %v443
        %v540 = vpack.c.b16 %v535, %v534
        %v541 = vpack.c.b16 %v537, %v536
        %v542 = vpack.c.b16 %v539, %v538
        %v547 = vunpack.c.l.b16 %v517
        %v548 = vunpack.c.l.b16 %v518
        %v549 = vunpack.c.l.b16 %v519
        %v550 = vunpack.c.l.b16 %v520
        %v551 = vpack.c.b16 %v548, %v547
        %v552 = vpack.c.b16 %v550, %v549
        %v556 = vsel %vm472, %v540, 0
        %v559 = vsel %vm472, %v541, 0
        %v562 = vsel %vm472, %v542, 0
        %564 = vmatprep.subr.bf16.mxu0 0
        %565 = vmatpush1.bf16.msra.mxu0 %v551
        %566 = vmatprep.subr.bf16.mxu0 0
        %567 = vmatpush1.bf16.msra.mxu0 %v552
        %568 = vmatprep.subr.bf16.mxu0 0
        %569 = vmatpush1.bf16.msra.mxu0 0
        %570 = vmatprep.subr.bf16.mxu0 0
        %571 = vmatpush1.bf16.msra.mxu0 0
        %572 = vmatprep.subr.bf16.mxu0 0
        %573 = vmatpush1.bf16.msra.mxu0 0
        %574 = vmatprep.subr.bf16.mxu0 0
        %575 = vmatpush1.bf16.msra.mxu0 0
        %576 = vmatprep.subr.bf16.mxu0 0
        %577 = vmatpush1.bf16.msra.mxu0 0
        %578 = vmatprep.subr.bf16.mxu0 0
        %579 = vmatpush1.bf16.msra.mxu0 0
        %580 = vmatprep.subr.bf16.mxu0 0
        %581 = vmatpush1.bf16.msra.mxu0 0
        %582 = vmatprep.subr.bf16.mxu0 0
        %583 = vmatpush1.bf16.msra.mxu0 0
        %584 = vmatprep.subr.bf16.mxu0 0
        %585 = vmatpush1.bf16.msra.mxu0 0
        %586 = vmatprep.subr.bf16.mxu0 0
        %587 = vmatpush1.bf16.msra.mxu0 0
        %588 = vmatprep.subr.bf16.mxu0 0
        %589 = vmatpush1.bf16.msra.mxu0 0
        %590 = vmatprep.subr.bf16.mxu0 0
        %591 = vmatpush1.bf16.msra.mxu0 0
        %592 = vmatprep.subr.bf16.mxu0 0
        %593 = vmatpush1.bf16.msra.mxu0 0
        %594 = vmatprep.subr.bf16.mxu0 0
        %595 = vmatpush1.bf16.msra.mxu0 0
        %596 = vmatprep.mubr.bf16.mxu0 0
        %597 = vmatmul.mubr.bf16.gmra.mrb[0].mxu0 %v556
        %v598 = vpop.f32.mrb[0].mxu0
        %v599 = vadd.f32 %v526, %v598
        %v600 = vpop.f32.mrb[0].mxu0
        %v601 = vpop.f32.mrb[0].mxu0
        %v602 = vadd.f32 %v526, %v601
        %v603 = vpop.f32.mrb[0].mxu0
        %604 = vmatprep.mubr.bf16.mxu0 0
        %605 = vmatmul.mubr.bf16.gmra.mrb[0].mxu0 %v559
        %v606 = vpop.f32.mrb[0].mxu0
        %v607 = vadd.f32 %v526, %v606
        %v608 = vpop.f32.mrb[0].mxu0
        %v609 = vpop.f32.mrb[0].mxu0
        %v610 = vadd.f32 %v526, %v609
        %v611 = vpop.f32.mrb[0].mxu0
        %612 = vmatprep.mubr.bf16.mxu0 0
        %613 = vmatmul.mubr.bf16.gmra.mrb[0].mxu0 %v562
        %v614 = vpop.f32.mrb[0].mxu0
        %v615 = vadd.f32 %v526, %v614
        %v616 = vpop.f32.mrb[0].mxu0
        %v617 = vpop.f32.mrb[0].mxu0
        %v618 = vadd.f32 %v526, %v617
        %v619 = vpop.f32.mrb[0].mxu0
        %620 = vdwg.mxu0
        %v621 = vld [vmem:[#allocation10] sm:$0xf]
        %v622 = vld [vmem:[#allocation10 + $0x4] sm:$0xf]
        %v623 = vld [vmem:[#allocation10 + $0x8] sm:$0xf]
        %v624 = vld [vmem:[#allocation10 + $0xc] sm:$0xf]
        %v625 = vld [vmem:[%s7] sm:$0x1]
        %v627 = vlaneseq
        %v628 = vshrl.u32 %v627, 7
        %v629 = vsub.s32 0, %v628
        %v630 = vrot.slane %v625, %v629
        %v636 = vunpack.c.l.b16 %v621
        %v637 = vunpack.c.l.b16 %v622
        %v638 = vunpack.c.l.b16 %v623
        %v639 = vunpack.c.l.b16 %v624
        %v640 = vpack.c.b16 %v637, %v636
        %v641 = vpack.c.b16 %v639, %v638
        %644 = vmatprep.subr.bf16.mxu0 0
        %645 = vmatpush1.bf16.msra.mxu0 %v640
        %646 = vmatprep.subr.bf16.mxu0 0
        %647 = vmatpush1.bf16.msra.mxu0 %v641
        %648 = vmatprep.subr.bf16.mxu0 0
        %649 = vmatpush1.bf16.msra.mxu0 0
        %650 = vmatprep.subr.bf16.mxu0 0
        %651 = vmatpush1.bf16.msra.mxu0 0
        %652 = vmatprep.subr.bf16.mxu0 0
        %653 = vmatpush1.bf16.msra.mxu0 0
        %654 = vmatprep.subr.bf16.mxu0 0
        %655 = vmatpush1.bf16.msra.mxu0 0
        %656 = vmatprep.subr.bf16.mxu0 0
        %657 = vmatpush1.bf16.msra.mxu0 0
        %658 = vmatprep.subr.bf16.mxu0 0
        %659 = vmatpush1.bf16.msra.mxu0 0
        %660 = vmatprep.subr.bf16.mxu0 0
        %661 = vmatpush1.bf16.msra.mxu0 0
        %662 = vmatprep.subr.bf16.mxu0 0
        %663 = vmatpush1.bf16.msra.mxu0 0
        %664 = vmatprep.subr.bf16.mxu0 0
        %665 = vmatpush1.bf16.msra.mxu0 0
        %666 = vmatprep.subr.bf16.mxu0 0
        %667 = vmatpush1.bf16.msra.mxu0 0
        %668 = vmatprep.subr.bf16.mxu0 0
        %669 = vmatpush1.bf16.msra.mxu0 0
        %670 = vmatprep.subr.bf16.mxu0 0
        %671 = vmatpush1.bf16.msra.mxu0 0
        %672 = vmatprep.subr.bf16.mxu0 0
        %673 = vmatpush1.bf16.msra.mxu0 0
        %674 = vmatprep.subr.bf16.mxu0 0
        %675 = vmatpush1.bf16.msra.mxu0 0
        %676 = vmatprep.mubr.bf16.mxu0 0
        %677 = vmatmul.mubr.bf16.gmra.mrb[0].mxu0 %v556
        %v678 = vpop.f32.mrb[0].mxu0
        %v679 = vadd.f32 %v630, %v678
        %v680 = vpop.f32.mrb[0].mxu0
        %v681 = vpop.f32.mrb[0].mxu0
        %v682 = vadd.f32 %v630, %v681
        %v683 = vpop.f32.mrb[0].mxu0
        %684 = vmatprep.mubr.bf16.mxu0 0
        %685 = vmatmul.mubr.bf16.gmra.mrb[0].mxu0 %v559
        %v686 = vpop.f32.mrb[0].mxu0
        %v687 = vadd.f32 %v630, %v686
        %v688 = vpop.f32.mrb[0].mxu0
        %v689 = vpop.f32.mrb[0].mxu0
        %v690 = vadd.f32 %v630, %v689
        %v691 = vpop.f32.mrb[0].mxu0
        %692 = vmatprep.mubr.bf16.mxu0 0
        %693 = vmatmul.mubr.bf16.gmra.mrb[0].mxu0 %v562
        %v694 = vpop.f32.mrb[0].mxu0
        %v695 = vadd.f32 %v630, %v694
        %v696 = vpop.f32.mrb[0].mxu0
        %v697 = vpop.f32.mrb[0].mxu0
        %v698 = vadd.f32 %v630, %v697
        %v699 = vpop.f32.mrb[0].mxu0
        %700 = vdwg.mxu0
        %v701 = vpack.c.bf16 %v511, %v511
        %v702 = vpack.c.bf16 %v514, %v514
        %v703 = vpack.c.bf16 %v599, %v599
        %v704 = vpack.c.bf16 %v602, %v602
        %v705 = vpack.c.bf16 %v679, %v679
        %v706 = vpack.c.bf16 %v682, %v682
        %v708 = vsel %vm472, %v701, 0
        %v711 = vsel %vm472, %v703, 0
        %713 = vmatprep.subr.bf16.mxu0 0
        %714 = vmatpush1.bf16.xpose.msra.mxu0 %v711
        %715 = vmatprep.subr.bf16.mxu0 0
        %716 = vmatpush1.bf16.xpose.msra.mxu0 0
        %717 = vmatprep.subr.bf16.mxu0 0
        %718 = vmatpush1.bf16.xpose.msra.mxu0 0
        %719 = vmatprep.subr.bf16.mxu0 0
        %720 = vmatpush1.bf16.xpose.msra.mxu0 0
        %721 = vmatprep.subr.bf16.mxu0 0
        %722 = vmatpush1.bf16.xpose.msra.mxu0 0
        %723 = vmatprep.subr.bf16.mxu0 0
        %724 = vmatpush1.bf16.xpose.msra.mxu0 0
        %725 = vmatprep.subr.bf16.mxu0 0
        %726 = vmatpush1.bf16.xpose.msra.mxu0 0
        %727 = vmatprep.subr.bf16.mxu0 0
        %728 = vmatpush1.bf16.xpose.msra.mxu0 0
        %729 = vmatprep.subr.bf16.mxu0 0
        %730 = vmatpush1.bf16.xpose.msra.mxu0 0
        %731 = vmatprep.subr.bf16.mxu0 0
        %732 = vmatpush1.bf16.xpose.msra.mxu0 0
        %733 = vmatprep.subr.bf16.mxu0 0
        %734 = vmatpush1.bf16.xpose.msra.mxu0 0
        %735 = vmatprep.subr.bf16.mxu0 0
        %736 = vmatpush1.bf16.xpose.msra.mxu0 0
        %737 = vmatprep.subr.bf16.mxu0 0
        %738 = vmatpush1.bf16.xpose.msra.mxu0 0
        %739 = vmatprep.subr.bf16.mxu0 0
        %740 = vmatpush1.bf16.xpose.msra.mxu0 0
        %741 = vmatprep.subr.bf16.mxu0 0
        %742 = vmatpush1.bf16.xpose.msra.mxu0 0
        %743 = vmatprep.subr.bf16.mxu0 0
        %744 = vmatpush1.bf16.xpose.msra.mxu0 0
        %745 = vmatprep.mubr.bf16.mxu0 0
        %746 = vmatmul.mubr.bf16.gmra.mrb[0].mxu0 %v708
        %v747 = vpop.f32.mrb[0].mxu0
        %v748 = vadd.f32 0.0, %v747
        %v749 = vpop.f32.mrb[0].mxu0
        %v750 = vpop.f32.mrb[0].mxu0
        %v751 = vpop.f32.mrb[0].mxu0
        %752 = vdwg.mxu0
        %v754 = vsel %vm472, %v702, 0
        %v757 = vsel %vm472, %v704, 0
        %759 = vmatprep.subr.bf16.mxu0 0
        %760 = vmatpush1.bf16.xpose.msra.mxu0 %v757
        %761 = vmatprep.subr.bf16.mxu0 0
        %762 = vmatpush1.bf16.xpose.msra.mxu0 0
        %763 = vmatprep.subr.bf16.mxu0 0
        %764 = vmatpush1.bf16.xpose.msra.mxu0 0
        %765 = vmatprep.subr.bf16.mxu0 0
        %766 = vmatpush1.bf16.xpose.msra.mxu0 0
        %767 = vmatprep.subr.bf16.mxu0 0
        %768 = vmatpush1.bf16.xpose.msra.mxu0 0
        %769 = vmatprep.subr.bf16.mxu0 0
        %770 = vmatpush1.bf16.xpose.msra.mxu0 0
        %771 = vmatprep.subr.bf16.mxu0 0
        %772 = vmatpush1.bf16.xpose.msra.mxu0 0
        %773 = vmatprep.subr.bf16.mxu0 0
        %774 = vmatpush1.bf16.xpose.msra.mxu0 0
        %775 = vmatprep.subr.bf16.mxu0 0
        %776 = vmatpush1.bf16.xpose.msra.mxu0 0
        %777 = vmatprep.subr.bf16.mxu0 0
        %778 = vmatpush1.bf16.xpose.msra.mxu0 0
        %779 = vmatprep.subr.bf16.mxu0 0
        %780 = vmatpush1.bf16.xpose.msra.mxu0 0
        %781 = vmatprep.subr.bf16.mxu0 0
        %782 = vmatpush1.bf16.xpose.msra.mxu0 0
        %783 = vmatprep.subr.bf16.mxu0 0
        %784 = vmatpush1.bf16.xpose.msra.mxu0 0
        %785 = vmatprep.subr.bf16.mxu0 0
        %786 = vmatpush1.bf16.xpose.msra.mxu0 0
        %787 = vmatprep.subr.bf16.mxu0 0
        %788 = vmatpush1.bf16.xpose.msra.mxu0 0
        %789 = vmatprep.subr.bf16.mxu0 0
        %790 = vmatpush1.bf16.xpose.msra.mxu0 0
        %791 = vmatprep.mubr.bf16.mxu0 0
        %792 = vmatmul.mubr.bf16.gmra.mrb[0].mxu0 %v754
        %v793 = vpop.f32.mrb[0].mxu0
        %v794 = vadd.f32 0.0, %v793
        %v795 = vpop.f32.mrb[0].mxu0
        %v796 = vpop.f32.mrb[0].mxu0
        %v797 = vpop.f32.mrb[0].mxu0
        %798 = vdwg.mxu0
        %vm799 = vcmask 64512
        %v800 = vsel %vm799, %v748, -inf
        %801 = vmax.xlane.f32.xlu0 %v800
        %v802 = vpop.xlane.xlu0 %801
        %v803 = vsel %vm799, %v794, -inf
        %804 = vmax.xlane.f32.xlu0 %v803
        %v805 = vpop.xlane.xlu0 %804
        %v806 = vsub.f32 %v748, %v802
        %v807 = vsub.f32 %v794, %v805
        %v808 = vmul.f32 %v806, 1.442695
        %v809 = vpow.pop %v808
        %v810 = vmul.f32 %v807, 1.442695
        %v811 = vpow.pop %v810
        %v812 = vsel %vm799, %v809, 0.0
        %813 = vadd.xlane.f32.xlu0 %v812
        %v814 = vpop.xlane.xlu0 %813
        %v815 = vsel %vm799, %v811, 0.0
        %816 = vadd.xlane.f32.xlu0 %v815
        %v817 = vpop.xlane.xlu0 %816
        %v818 = vrcp.pop %v814
        %v819 = vrcp.pop %v817
        %v820 = vmul.f32 %v809, %v818
        %v821 = vmul.f32 %v811, %v819
        %v822 = vpack.c.bf16 %v820, %v820
        %v823 = vpack.c.bf16 %v821, %v821
        %v825 = vsel %vm799, %v822, 0
        %vm827 = vcmask 1043456
        %v829 = vsel %vm827, %v705, 0
        %831 = vmatprep.subr.bf16.mxu0 0
        %832 = vmatpush1.bf16.msra.mxu0 %v829
        %833 = vmatprep.subr.bf16.mxu0 0
        %834 = vmatpush1.bf16.msra.mxu0 0
        %835 = vmatprep.subr.bf16.mxu0 0
        %836 = vmatpush1.bf16.msra.mxu0 0
        %837 = vmatprep.subr.bf16.mxu0 0
        %838 = vmatpush1.bf16.msra.mxu0 0
        %839 = vmatprep.subr.bf16.mxu0 0
        %840 = vmatpush1.bf16.msra.mxu0 0
        %841 = vmatprep.subr.bf16.mxu0 0
        %842 = vmatpush1.bf16.msra.mxu0 0
        %843 = vmatprep.subr.bf16.mxu0 0
        %844 = vmatpush1.bf16.msra.mxu0 0
        %845 = vmatprep.subr.bf16.mxu0 0
        %846 = vmatpush1.bf16.msra.mxu0 0
        %847 = vmatprep.subr.bf16.mxu0 0
        %848 = vmatpush1.bf16.msra.mxu0 0
        %849 = vmatprep.subr.bf16.mxu0 0
        %850 = vmatpush1.bf16.msra.mxu0 0
        %851 = vmatprep.subr.bf16.mxu0 0
        %852 = vmatpush1.bf16.msra.mxu0 0
        %853 = vmatprep.subr.bf16.mxu0 0
        %854 = vmatpush1.bf16.msra.mxu0 0
        %855 = vmatprep.subr.bf16.mxu0 0
        %856 = vmatpush1.bf16.msra.mxu0 0
        %857 = vmatprep.subr.bf16.mxu0 0
        %858 = vmatpush1.bf16.msra.mxu0 0
        %859 = vmatprep.subr.bf16.mxu0 0
        %860 = vmatpush1.bf16.msra.mxu0 0
        %861 = vmatprep.subr.bf16.mxu0 0
        %862 = vmatpush1.bf16.msra.mxu0 0
        %863 = vmatprep.mubr.bf16.mxu0 0
        %864 = vmatmul.mubr.bf16.gmra.mrb[0].mxu0 %v825
        %v865 = vpop.f32.mrb[0].mxu0
        %v866 = vadd.f32 0.0, %v865
        %v867 = vpop.f32.mrb[0].mxu0
        %v868 = vpop.f32.mrb[0].mxu0
        %v869 = vpop.f32.mrb[0].mxu0
        %870 = vdwg.mxu0
        %v872 = vsel %vm799, %v823, 0
        %v875 = vsel %vm827, %v706, 0
        %877 = vmatprep.subr.bf16.mxu0 0
        %878 = vmatpush1.bf16.msra.mxu0 %v875
        %879 = vmatprep.subr.bf16.mxu0 0
        %880 = vmatpush1.bf16.msra.mxu0 0
        %881 = vmatprep.subr.bf16.mxu0 0
        %882 = vmatpush1.bf16.msra.mxu0 0
        %883 = vmatprep.subr.bf16.mxu0 0
        %884 = vmatpush1.bf16.msra.mxu0 0
        %885 = vmatprep.subr.bf16.mxu0 0
        %886 = vmatpush1.bf16.msra.mxu0 0
        %887 = vmatprep.subr.bf16.mxu0 0
        %888 = vmatpush1.bf16.msra.mxu0 0
        %889 = vmatprep.subr.bf16.mxu0 0
        %890 = vmatpush1.bf16.msra.mxu0 0
        %891 = vmatprep.subr.bf16.mxu0 0
        %892 = vmatpush1.bf16.msra.mxu0 0
        %893 = vmatprep.subr.bf16.mxu0 0
        %894 = vmatpush1.bf16.msra.mxu0 0
        %895 = vmatprep.subr.bf16.mxu0 0
        %896 = vmatpush1.bf16.msra.mxu0 0
        %897 = vmatprep.subr.bf16.mxu0 0
        %898 = vmatpush1.bf16.msra.mxu0 0
        %899 = vmatprep.subr.bf16.mxu0 0
        %900 = vmatpush1.bf16.msra.mxu0 0
        %901 = vmatprep.subr.bf16.mxu0 0
        %902 = vmatpush1.bf16.msra.mxu0 0
        %903 = vmatprep.subr.bf16.mxu0 0
        %904 = vmatpush1.bf16.msra.mxu0 0
        %905 = vmatprep.subr.bf16.mxu0 0
        %906 = vmatpush1.bf16.msra.mxu0 0
        %907 = vmatprep.subr.bf16.mxu0 0
        %908 = vmatpush1.bf16.msra.mxu0 0
        %909 = vmatprep.mubr.bf16.mxu0 0
        %910 = vmatmul.mubr.bf16.gmra.mrb[0].mxu0 %v872
        %v911 = vpop.f32.mrb[0].mxu0
        %v912 = vadd.f32 0.0, %v911
        %v913 = vpop.f32.mrb[0].mxu0
        %v914 = vpop.f32.mrb[0].mxu0
        %v915 = vpop.f32.mrb[0].mxu0
        %916 = vdwg.mxu0
        %917 = vst.msk [vmem:[%s431] sm:$0xff] %vm472, %v866
        %918 = vst.msk [vmem:[%s431 + $0x8] sm:$0xff] %vm472, %v912
        %v919 = vpack.c.bf16 %v607, %v607
        %v920 = vpack.c.bf16 %v610, %v610
        %v921 = vpack.c.bf16 %v687, %v687
        %v922 = vpack.c.bf16 %v690, %v690
        %v924 = vsel %vm472, %v919, 0
        %926 = vmatprep.subr.bf16.mxu0 0
        %927 = vmatpush1.bf16.xpose.msra.mxu0 %v924
        %928 = vmatprep.subr.bf16.mxu0 0
        %929 = vmatpush1.bf16.xpose.msra.mxu0 0
        %930 = vmatprep.subr.bf16.mxu0 0
        %931 = vmatpush1.bf16.xpose.msra.mxu0 0
        %932 = vmatprep.subr.bf16.mxu0 0
        %933 = vmatpush1.bf16.xpose.msra.mxu0 0
        %934 = vmatprep.subr.bf16.mxu0 0
        %935 = vmatpush1.bf16.xpose.msra.mxu0 0
        %936 = vmatprep.subr.bf16.mxu0 0
        %937 = vmatpush1.bf16.xpose.msra.mxu0 0
        %938 = vmatprep.subr.bf16.mxu0 0
        %939 = vmatpush1.bf16.xpose.msra.mxu0 0
        %940 = vmatprep.subr.bf16.mxu0 0
        %941 = vmatpush1.bf16.xpose.msra.mxu0 0
        %942 = vmatprep.subr.bf16.mxu0 0
        %943 = vmatpush1.bf16.xpose.msra.mxu0 0
        %944 = vmatprep.subr.bf16.mxu0 0
        %945 = vmatpush1.bf16.xpose.msra.mxu0 0
        %946 = vmatprep.subr.bf16.mxu0 0
        %947 = vmatpush1.bf16.xpose.msra.mxu0 0
        %948 = vmatprep.subr.bf16.mxu0 0
        %949 = vmatpush1.bf16.xpose.msra.mxu0 0
        %950 = vmatprep.subr.bf16.mxu0 0
        %951 = vmatpush1.bf16.xpose.msra.mxu0 0
        %952 = vmatprep.subr.bf16.mxu0 0
        %953 = vmatpush1.bf16.xpose.msra.mxu0 0
        %954 = vmatprep.subr.bf16.mxu0 0
        %955 = vmatpush1.bf16.xpose.msra.mxu0 0
        %956 = vmatprep.subr.bf16.mxu0 0
        %957 = vmatpush1.bf16.xpose.msra.mxu0 0
        %958 = vmatprep.mubr.bf16.mxu0 0
        %959 = vmatmul.mubr.bf16.gmra.mrb[0].mxu0 %v708
        %v960 = vpop.f32.mrb[0].mxu0
        %v961 = vadd.f32 0.0, %v960
        %v962 = vpop.f32.mrb[0].mxu0
        %v963 = vpop.f32.mrb[0].mxu0
        %v964 = vpop.f32.mrb[0].mxu0
        %965 = vdwg.mxu0
        %v967 = vsel %vm472, %v920, 0
        %969 = vmatprep.subr.bf16.mxu0 0
        %970 = vmatpush1.bf16.xpose.msra.mxu0 %v967
        %971 = vmatprep.subr.bf16.mxu0 0
        %972 = vmatpush1.bf16.xpose.msra.mxu0 0
        %973 = vmatprep.subr.bf16.mxu0 0
        %974 = vmatpush1.bf16.xpose.msra.mxu0 0
        %975 = vmatprep.subr.bf16.mxu0 0
        %976 = vmatpush1.bf16.xpose.msra.mxu0 0
        %977 = vmatprep.subr.bf16.mxu0 0
        %978 = vmatpush1.bf16.xpose.msra.mxu0 0
        %979 = vmatprep.subr.bf16.mxu0 0
        %980 = vmatpush1.bf16.xpose.msra.mxu0 0
        %981 = vmatprep.subr.bf16.mxu0 0
        %982 = vmatpush1.bf16.xpose.msra.mxu0 0
        %983 = vmatprep.subr.bf16.mxu0 0
        %984 = vmatpush1.bf16.xpose.msra.mxu0 0
        %985 = vmatprep.subr.bf16.mxu0 0
        %986 = vmatpush1.bf16.xpose.msra.mxu0 0
        %987 = vmatprep.subr.bf16.mxu0 0
        %988 = vmatpush1.bf16.xpose.msra.mxu0 0
        %989 = vmatprep.subr.bf16.mxu0 0
        %990 = vmatpush1.bf16.xpose.msra.mxu0 0
        %991 = vmatprep.subr.bf16.mxu0 0
        %992 = vmatpush1.bf16.xpose.msra.mxu0 0
        %993 = vmatprep.subr.bf16.mxu0 0
        %994 = vmatpush1.bf16.xpose.msra.mxu0 0
        %995 = vmatprep.subr.bf16.mxu0 0
        %996 = vmatpush1.bf16.xpose.msra.mxu0 0
        %997 = vmatprep.subr.bf16.mxu0 0
        %998 = vmatpush1.bf16.xpose.msra.mxu0 0
        %999 = vmatprep.subr.bf16.mxu0 0
        %1000 = vmatpush1.bf16.xpose.msra.mxu0 0
        %1001 = vmatprep.mubr.bf16.mxu0 0
        %1002 = vmatmul.mubr.bf16.gmra.mrb[0].mxu0 %v754
        %v1003 = vpop.f32.mrb[0].mxu0
        %v1004 = vadd.f32 0.0, %v1003
        %v1005 = vpop.f32.mrb[0].mxu0
        %v1006 = vpop.f32.mrb[0].mxu0
        %v1007 = vpop.f32.mrb[0].mxu0
        %1008 = vdwg.mxu0
        %v1009 = vsel %vm799, %v961, -inf
        %1010 = vmax.xlane.f32.xlu0 %v1009
        %v1011 = vpop.xlane.xlu0 %1010
        %v1012 = vsel %vm799, %v1004, -inf
        %1013 = vmax.xlane.f32.xlu0 %v1012
        %v1014 = vpop.xlane.xlu0 %1013
        %v1015 = vsub.f32 %v961, %v1011
        %v1016 = vsub.f32 %v1004, %v1014
        %v1017 = vmul.f32 %v1015, 1.442695
        %v1018 = vpow.pop %v1017
        %v1019 = vmul.f32 %v1016, 1.442695
        %v1020 = vpow.pop %v1019
        %v1021 = vsel %vm799, %v1018, 0.0
        %1022 = vadd.xlane.f32.xlu0 %v1021
        %v1023 = vpop.xlane.xlu0 %1022
        %v1024 = vsel %vm799, %v1020, 0.0
        %1025 = vadd.xlane.f32.xlu0 %v1024
        %v1026 = vpop.xlane.xlu0 %1025
        %v1027 = vrcp.pop %v1023
        %v1028 = vrcp.pop %v1026
        %v1029 = vmul.f32 %v1018, %v1027
        %v1030 = vmul.f32 %v1020, %v1028
        %v1031 = vpack.c.bf16 %v1029, %v1029
        %v1032 = vpack.c.bf16 %v1030, %v1030
        %v1034 = vsel %vm799, %v1031, 0
        %v1037 = vsel %vm827, %v921, 0
        %1039 = vmatprep.subr.bf16.mxu0 0
        %1040 = vmatpush1.bf16.msra.mxu0 %v1037
        %1041 = vmatprep.subr.bf16.mxu0 0
        %1042 = vmatpush1.bf16.msra.mxu0 0
        %1043 = vmatprep.subr.bf16.mxu0 0
        %1044 = vmatpush1.bf16.msra.mxu0 0
        %1045 = vmatprep.subr.bf16.mxu0 0
        %1046 = vmatpush1.bf16.msra.mxu0 0
        %1047 = vmatprep.subr.bf16.mxu0 0
        %1048 = vmatpush1.bf16.msra.mxu0 0
        %1049 = vmatprep.subr.bf16.mxu0 0
        %1050 = vmatpush1.bf16.msra.mxu0 0
        %1051 = vmatprep.subr.bf16.mxu0 0
        %1052 = vmatpush1.bf16.msra.mxu0 0
        %1053 = vmatprep.subr.bf16.mxu0 0
        %1054 = vmatpush1.bf16.msra.mxu0 0
        %1055 = vmatprep.subr.bf16.mxu0 0
        %1056 = vmatpush1.bf16.msra.mxu0 0
        %1057 = vmatprep.subr.bf16.mxu0 0
        %1058 = vmatpush1.bf16.msra.mxu0 0
        %1059 = vmatprep.subr.bf16.mxu0 0
        %1060 = vmatpush1.bf16.msra.mxu0 0
        %1061 = vmatprep.subr.bf16.mxu0 0
        %1062 = vmatpush1.bf16.msra.mxu0 0
        %1063 = vmatprep.subr.bf16.mxu0 0
        %1064 = vmatpush1.bf16.msra.mxu0 0
        %1065 = vmatprep.subr.bf16.mxu0 0
        %1066 = vmatpush1.bf16.msra.mxu0 0
        %1067 = vmatprep.subr.bf16.mxu0 0
        %1068 = vmatpush1.bf16.msra.mxu0 0
        %1069 = vmatprep.subr.bf16.mxu0 0
        %1070 = vmatpush1.bf16.msra.mxu0 0
        %1071 = vmatprep.mubr.bf16.mxu0 0
        %1072 = vmatmul.mubr.bf16.gmra.mrb[0].mxu0 %v1034
        %v1073 = vpop.f32.mrb[0].mxu0
        %v1074 = vadd.f32 0.0, %v1073
        %v1075 = vpop.f32.mrb[0].mxu0
        %v1076 = vpop.f32.mrb[0].mxu0
        %v1077 = vpop.f32.mrb[0].mxu0
        %1078 = vdwg.mxu0
        %v1080 = vsel %vm799, %v1032, 0
        %v1083 = vsel %vm827, %v922, 0
        %1085 = vmatprep.subr.bf16.mxu0 0
        %1086 = vmatpush1.bf16.msra.mxu0 %v1083
        %1087 = vmatprep.subr.bf16.mxu0 0
        %1088 = vmatpush1.bf16.msra.mxu0 0
        %1089 = vmatprep.subr.bf16.mxu0 0
        %1090 = vmatpush1.bf16.msra.mxu0 0
        %1091 = vmatprep.subr.bf16.mxu0 0
        %1092 = vmatpush1.bf16.msra.mxu0 0
        %1093 = vmatprep.subr.bf16.mxu0 0
        %1094 = vmatpush1.bf16.msra.mxu0 0
        %1095 = vmatprep.subr.bf16.mxu0 0
        %1096 = vmatpush1.bf16.msra.mxu0 0
        %1097 = vmatprep.subr.bf16.mxu0 0
        %1098 = vmatpush1.bf16.msra.mxu0 0
        %1099 = vmatprep.subr.bf16.mxu0 0
        %1100 = vmatpush1.bf16.msra.mxu0 0
        %1101 = vmatprep.subr.bf16.mxu0 0
        %1102 = vmatpush1.bf16.msra.mxu0 0
        %1103 = vmatprep.subr.bf16.mxu0 0
        %1104 = vmatpush1.bf16.msra.mxu0 0
        %1105 = vmatprep.subr.bf16.mxu0 0
        %1106 = vmatpush1.bf16.msra.mxu0 0
        %1107 = vmatprep.subr.bf16.mxu0 0
        %1108 = vmatpush1.bf16.msra.mxu0 0
        %1109 = vmatprep.subr.bf16.mxu0 0
        %1110 = vmatpush1.bf16.msra.mxu0 0
        %1111 = vmatprep.subr.bf16.mxu0 0
        %1112 = vmatpush1.bf16.msra.mxu0 0
        %1113 = vmatprep.subr.bf16.mxu0 0
        %1114 = vmatpush1.bf16.msra.mxu0 0
        %1115 = vmatprep.subr.bf16.mxu0 0
        %1116 = vmatpush1.bf16.msra.mxu0 0
        %1117 = vmatprep.mubr.bf16.mxu0 0
        %1118 = vmatmul.mubr.bf16.gmra.mrb[0].mxu0 %v1080
        %v1119 = vpop.f32.mrb[0].mxu0
        %v1120 = vadd.f32 0.0, %v1119
        %v1121 = vpop.f32.mrb[0].mxu0
        %v1122 = vpop.f32.mrb[0].mxu0
        %v1123 = vpop.f32.mrb[0].mxu0
        %1124 = vdwg.mxu0
        %1127 = vrot.lane.b32.xlu0 %v1074, 32
        %v1128 = vpop.permute.xlu0 %1127
        %1129 = vrot.lane.b32.xlu0 %v1120, 32
        %v1130 = vpop.permute.xlu0 %1129
        %vm1133 = vcmask 523520
        %1134 = vst.msk [vmem:[%s431] sm:$0xff] %vm1133, %v1128
        %1135 = vst.msk [vmem:[%s431 + $0x8] sm:$0xff] %vm1133, %v1130
        %v1136 = vpack.c.bf16 %v615, %v615
        %v1137 = vpack.c.bf16 %v618, %v618
        %v1138 = vpack.c.bf16 %v695, %v695
        %v1139 = vpack.c.bf16 %v698, %v698
        %v1141 = vsel %vm472, %v1136, 0
        %1143 = vmatprep.subr.bf16.mxu0 0
        %1144 = vmatpush1.bf16.xpose.msra.mxu0 %v1141
        %1145 = vmatprep.subr.bf16.mxu0 0
        %1146 = vmatpush1.bf16.xpose.msra.mxu0 0
        %1147 = vmatprep.subr.bf16.mxu0 0
        %1148 = vmatpush1.bf16.xpose.msra.mxu0 0
        %1149 = vmatprep.subr.bf16.mxu0 0
        %1150 = vmatpush1.bf16.xpose.msra.mxu0 0
        %1151 = vmatprep.subr.bf16.mxu0 0
        %1152 = vmatpush1.bf16.xpose.msra.mxu0 0
        %1153 = vmatprep.subr.bf16.mxu0 0
        %1154 = vmatpush1.bf16.xpose.msra.mxu0 0
        %1155 = vmatprep.subr.bf16.mxu0 0
        %1156 = vmatpush1.bf16.xpose.msra.mxu0 0
        %1157 = vmatprep.subr.bf16.mxu0 0
        %1158 = vmatpush1.bf16.xpose.msra.mxu0 0
        %1159 = vmatprep.subr.bf16.mxu0 0
        %1160 = vmatpush1.bf16.xpose.msra.mxu0 0
        %1161 = vmatprep.subr.bf16.mxu0 0
        %1162 = vmatpush1.bf16.xpose.msra.mxu0 0
        %1163 = vmatprep.subr.bf16.mxu0 0
        %1164 = vmatpush1.bf16.xpose.msra.mxu0 0
        %1165 = vmatprep.subr.bf16.mxu0 0
        %1166 = vmatpush1.bf16.xpose.msra.mxu0 0
        %1167 = vmatprep.subr.bf16.mxu0 0
        %1168 = vmatpush1.bf16.xpose.msra.mxu0 0
        %1169 = vmatprep.subr.bf16.mxu0 0
        %1170 = vmatpush1.bf16.xpose.msra.mxu0 0
        %1171 = vmatprep.subr.bf16.mxu0 0
        %1172 = vmatpush1.bf16.xpose.msra.mxu0 0
        %1173 = vmatprep.subr.bf16.mxu0 0
        %1174 = vmatpush1.bf16.xpose.msra.mxu0 0
        %1175 = vmatprep.mubr.bf16.mxu0 0
        %1176 = vmatmul.mubr.bf16.gmra.mrb[0].mxu0 %v708
        %v1177 = vpop.f32.mrb[0].mxu0
        %v1178 = vadd.f32 0.0, %v1177
        %v1179 = vpop.f32.mrb[0].mxu0
        %v1180 = vpop.f32.mrb[0].mxu0
        %v1181 = vpop.f32.mrb[0].mxu0
        %1182 = vdwg.mxu0
        %v1184 = vsel %vm472, %v1137, 0
        %1186 = vmatprep.subr.bf16.mxu0 0
        %1187 = vmatpush1.bf16.xpose.msra.mxu0 %v1184
        %1188 = vmatprep.subr.bf16.mxu0 0
        %1189 = vmatpush1.bf16.xpose.msra.mxu0 0
        %1190 = vmatprep.subr.bf16.mxu0 0
        %1191 = vmatpush1.bf16.xpose.msra.mxu0 0
        %1192 = vmatprep.subr.bf16.mxu0 0
        %1193 = vmatpush1.bf16.xpose.msra.mxu0 0
        %1194 = vmatprep.subr.bf16.mxu0 0
        %1195 = vmatpush1.bf16.xpose.msra.mxu0 0
        %1196 = vmatprep.subr.bf16.mxu0 0
        %1197 = vmatpush1.bf16.xpose.msra.mxu0 0
        %1198 = vmatprep.subr.bf16.mxu0 0
        %1199 = vmatpush1.bf16.xpose.msra.mxu0 0
        %1200 = vmatprep.subr.bf16.mxu0 0
        %1201 = vmatpush1.bf16.xpose.msra.mxu0 0
        %1202 = vmatprep.subr.bf16.mxu0 0
        %1203 = vmatpush1.bf16.xpose.msra.mxu0 0
        %1204 = vmatprep.subr.bf16.mxu0 0
        %1205 = vmatpush1.bf16.xpose.msra.mxu0 0
        %1206 = vmatprep.subr.bf16.mxu0 0
        %1207 = vmatpush1.bf16.xpose.msra.mxu0 0
        %1208 = vmatprep.subr.bf16.mxu0 0
        %1209 = vmatpush1.bf16.xpose.msra.mxu0 0
        %1210 = vmatprep.subr.bf16.mxu0 0
        %1211 = vmatpush1.bf16.xpose.msra.mxu0 0
        %1212 = vmatprep.subr.bf16.mxu0 0
        %1213 = vmatpush1.bf16.xpose.msra.mxu0 0
        %1214 = vmatprep.subr.bf16.mxu0 0
        %1215 = vmatpush1.bf16.xpose.msra.mxu0 0
        %1216 = vmatprep.subr.bf16.mxu0 0
        %1217 = vmatpush1.bf16.xpose.msra.mxu0 0
        %1218 = vmatprep.mubr.bf16.mxu0 0
        %1219 = vmatmul.mubr.bf16.gmra.mrb[0].mxu0 %v754
        %v1220 = vpop.f32.mrb[0].mxu0
        %v1221 = vadd.f32 0.0, %v1220
        %v1222 = vpop.f32.mrb[0].mxu0
        %v1223 = vpop.f32.mrb[0].mxu0
        %v1224 = vpop.f32.mrb[0].mxu0
        %1225 = vdwg.mxu0
        %v1226 = vsel %vm799, %v1178, -inf
        %1227 = vmax.xlane.f32.xlu0 %v1226
        %v1228 = vpop.xlane.xlu0 %1227
        %v1229 = vsel %vm799, %v1221, -inf
        %1230 = vmax.xlane.f32.xlu0 %v1229
        %v1231 = vpop.xlane.xlu0 %1230
        %v1232 = vsub.f32 %v1178, %v1228
        %v1233 = vsub.f32 %v1221, %v1231
        %v1234 = vmul.f32 %v1232, 1.442695
        %v1235 = vpow.pop %v1234
        %v1236 = vmul.f32 %v1233, 1.442695
        %v1237 = vpow.pop %v1236
        %v1238 = vsel %vm799, %v1235, 0.0
        %1239 = vadd.xlane.f32.xlu0 %v1238
        %v1240 = vpop.xlane.xlu0 %1239
        %v1241 = vsel %vm799, %v1237, 0.0
        %1242 = vadd.xlane.f32.xlu0 %v1241
        %v1243 = vpop.xlane.xlu0 %1242
        %v1244 = vrcp.pop %v1240
        %v1245 = vrcp.pop %v1243
        %v1246 = vmul.f32 %v1235, %v1244
        %v1247 = vmul.f32 %v1237, %v1245
        %v1248 = vpack.c.bf16 %v1246, %v1246
        %v1249 = vpack.c.bf16 %v1247, %v1247
        %v1251 = vsel %vm799, %v1248, 0
        %v1254 = vsel %vm827, %v1138, 0
        %1256 = vmatprep.subr.bf16.mxu0 0
        %1257 = vmatpush1.bf16.msra.mxu0 %v1254
        %1258 = vmatprep.subr.bf16.mxu0 0
        %1259 = vmatpush1.bf16.msra.mxu0 0
        %1260 = vmatprep.subr.bf16.mxu0 0
        %1261 = vmatpush1.bf16.msra.mxu0 0
        %1262 = vmatprep.subr.bf16.mxu0 0
        %1263 = vmatpush1.bf16.msra.mxu0 0
        %1264 = vmatprep.subr.bf16.mxu0 0
        %1265 = vmatpush1.bf16.msra.mxu0 0
        %1266 = vmatprep.subr.bf16.mxu0 0
        %1267 = vmatpush1.bf16.msra.mxu0 0
        %1268 = vmatprep.subr.bf16.mxu0 0
        %1269 = vmatpush1.bf16.msra.mxu0 0
        %1270 = vmatprep.subr.bf16.mxu0 0
        %1271 = vmatpush1.bf16.msra.mxu0 0
        %1272 = vmatprep.subr.bf16.mxu0 0
        %1273 = vmatpush1.bf16.msra.mxu0 0
        %1274 = vmatprep.subr.bf16.mxu0 0
        %1275 = vmatpush1.bf16.msra.mxu0 0
        %1276 = vmatprep.subr.bf16.mxu0 0
        %1277 = vmatpush1.bf16.msra.mxu0 0
        %1278 = vmatprep.subr.bf16.mxu0 0
        %1279 = vmatpush1.bf16.msra.mxu0 0
        %1280 = vmatprep.subr.bf16.mxu0 0
        %1281 = vmatpush1.bf16.msra.mxu0 0
        %1282 = vmatprep.subr.bf16.mxu0 0
        %1283 = vmatpush1.bf16.msra.mxu0 0
        %1284 = vmatprep.subr.bf16.mxu0 0
        %1285 = vmatpush1.bf16.msra.mxu0 0
        %1286 = vmatprep.subr.bf16.mxu0 0
        %1287 = vmatpush1.bf16.msra.mxu0 0
        %1288 = vmatprep.mubr.bf16.mxu0 0
        %1289 = vmatmul.mubr.bf16.gmra.mrb[0].mxu0 %v1251
        %v1290 = vpop.f32.mrb[0].mxu0
        %v1291 = vadd.f32 0.0, %v1290
        %v1292 = vpop.f32.mrb[0].mxu0
        %v1293 = vpop.f32.mrb[0].mxu0
        %v1294 = vpop.f32.mrb[0].mxu0
        %1295 = vdwg.mxu0
        %v1297 = vsel %vm799, %v1249, 0
        %v1300 = vsel %vm827, %v1139, 0
        %1302 = vmatprep.subr.bf16.mxu0 0
        %1303 = vmatpush1.bf16.msra.mxu0 %v1300
        %1304 = vmatprep.subr.bf16.mxu0 0
        %1305 = vmatpush1.bf16.msra.mxu0 0
        %1306 = vmatprep.subr.bf16.mxu0 0
        %1307 = vmatpush1.bf16.msra.mxu0 0
        %1308 = vmatprep.subr.bf16.mxu0 0
        %1309 = vmatpush1.bf16.msra.mxu0 0
        %1310 = vmatprep.subr.bf16.mxu0 0
        %1311 = vmatpush1.bf16.msra.mxu0 0
        %1312 = vmatprep.subr.bf16.mxu0 0
        %1313 = vmatpush1.bf16.msra.mxu0 0
        %1314 = vmatprep.subr.bf16.mxu0 0
        %1315 = vmatpush1.bf16.msra.mxu0 0
        %1316 = vmatprep.subr.bf16.mxu0 0
        %1317 = vmatpush1.bf16.msra.mxu0 0
        %1318 = vmatprep.subr.bf16.mxu0 0
        %1319 = vmatpush1.bf16.msra.mxu0 0
        %1320 = vmatprep.subr.bf16.mxu0 0
        %1321 = vmatpush1.bf16.msra.mxu0 0
        %1322 = vmatprep.subr.bf16.mxu0 0
        %1323 = vmatpush1.bf16.msra.mxu0 0
        %1324 = vmatprep.subr.bf16.mxu0 0
        %1325 = vmatpush1.bf16.msra.mxu0 0
        %1326 = vmatprep.subr.bf16.mxu0 0
        %1327 = vmatpush1.bf16.msra.mxu0 0
        %1328 = vmatprep.subr.bf16.mxu0 0
        %1329 = vmatpush1.bf16.msra.mxu0 0
        %1330 = vmatprep.subr.bf16.mxu0 0
        %1331 = vmatpush1.bf16.msra.mxu0 0
        %1332 = vmatprep.subr.bf16.mxu0 0
        %1333 = vmatpush1.bf16.msra.mxu0 0
        %1334 = vmatprep.mubr.bf16.mxu0 0
        %1335 = vmatmul.mubr.bf16.gmra.mrb[0].mxu0 %v1297
        %v1336 = vpop.f32.mrb[0].mxu0
        %v1337 = vadd.f32 0.0, %v1336
        %v1338 = vpop.f32.mrb[0].mxu0
        %v1339 = vpop.f32.mrb[0].mxu0
        %v1340 = vpop.f32.mrb[0].mxu0
        %1341 = vdwg.mxu0
        %1344 = vrot.lane.b32.xlu0 %v1291, 64
        %v1345 = vpop.permute.xlu0 %1344
        %1346 = vrot.lane.b32.xlu0 %v1337, 64
        %v1347 = vpop.permute.xlu0 %1346
        %vm1350 = vcmask 785920
        %1351 = vst.msk [vmem:[%s431] sm:$0xff] %vm1350, %v1345
        %1352 = vst.msk [vmem:[%s431 + $0x8] sm:$0xff] %vm1350, %v1347
        %s1353 = sand.u32 %s215, 1
        %s1354 = scalar_lea.sflag [#allocation4], %s1353
        %s1355 = sand.u32 %s215, 1
        %s1356 = smul.addr %s1355, 16
        %s1357 = scalar_lea.vmem [#allocation11], %s1356
        // Predicated region
        $region73: #{tpu_custom_call.1} parent=51 // pred_check
          %p1358 = pneg %p225
        $region74: #{tpu_custom_call.1} parent=51 // pred_check_branch
          %1360 = sbr.rel (%p1358) target = $region76
        $region75: #{tpu_custom_call.1} parent=51 // pred_region
          %s1361 = smul.u32 2, %s29
          %s1363 = ssub.s32 256, 256
          %1364 = vsyncadd %s1354, %s1363
          %s1365 = smul.addr %s1361, 128
          %s1366 = scalar_lea.hbm %s8, %s1365
          %s1367 = sshll.u32 %s1357, 4
          %s1368 = int_to_ptr.vmem [resolvable:$true] %s1367
          %1373 = dma.vmem_to_hbm [thread:$0]  %s1368, 256, %s1366, %s1354, 128, 128, 8
        $region76: #{tpu_custom_call.1} parent=51 // pred_fallthru
          _
      $region52: #{tpu_custom_call.1} parent=5 // pred_fallthru
        _
      %p1374 = scmp.le.s32.totalorder 2, %s24
      // Predicated region
      $region77: #{tpu_custom_call.1} parent=5 // pred_check
        %p1375 = pneg %p1374
      $region78: #{tpu_custom_call.1} parent=5 // pred_check_branch
        %1377 = sbr.rel (%p1375) target = $region80
      $region79: #{tpu_custom_call.1} parent=5 // pred_region
        %s1378 = ssub.s32 %s24, 2
        // Predicated region
        $region81: #{tpu_custom_call.1} parent=79 // pred_check
          %p1379 = pneg %p231
        $region82: #{tpu_custom_call.1} parent=79 // pred_check_branch
          %1381 = sbr.rel (%p1379) target = $region84
        $region83: #{tpu_custom_call.1} parent=79 // pred_region
          %s1382 = sand.u32 %s216, 1
          %s1383 = scalar_lea.sflag [#allocation4], %s1382
          %s1384 = sand.u32 %s216, 1
          %s1385 = smul.addr %s1384, 16
          %s1386 = scalar_lea.vmem [#allocation11], %s1385
          %1387 = dma.done %s1383, 256
        $region84: #{tpu_custom_call.1} parent=79 // pred_fallthru
          _
      $region80: #{tpu_custom_call.1} parent=5 // pred_fallthru
        _
    $region6: #{tpu_custom_call.1} parent=1 // loop_footer
      %s28 = sadd.s32 1, %s24
    $region7: #{tpu_custom_call.1} parent=1 // loop_footer_branch
      %23 = sbr.rel target = $region3
    $region8: #{tpu_custom_call.1} parent=1 // loop_exit
      _
    %1388 = vsyncpa [#allocation3], 1
    %s1389 = scalar_lea.sflag [#allocation3], 1
    %1390 = vsyncpa %s1389, 1
    %1391 = vsyncpa [#allocation6], 1
    %s1392 = scalar_lea.sflag [#allocation6], 1
    %1393 = vsyncpa %s1392, 1
    %1394 = vsyncpa [#allocation9], 1
    %1395 = vsyncpa [#allocation4], 1
    %s1396 = scalar_lea.sflag [#allocation4], 1
    %1397 = vsyncpa %s1396, 1

</llo_original>
